<compile_context>
chip_gen: v6e
topology: v6e:2x2x1
jax: 0.10.0
libtpu: 0.0.40
codegen_flags: <defaults>
</compile_context>

<pallas_src>
import functools
import jax
import jax.numpy as jnp
from jax.experimental import pallas as pl
from jax.experimental.pallas import tpu as pltpu

# ----------------------------- config (toy dims) ----------------------------
B = 2            # batch
L = 8            # sequence length
D = 32           # hidden_size
H = 4            # num_heads
HD = D // H      # head_dim
I = 64           # intermediate_size
NUM_LAYERS = 2
EPS = 1e-6       # layer_norm_eps
SCALE = HD ** (-0.5)


# ------------------------------ Pallas kernel -------------------------------
def _layer_norm(y, gamma, beta, eps):
    # single-pass statistics: var = E[y^2] - E[y]^2  (one reduction pass fewer)
    mu = jnp.mean(y, axis=-1, keepdims=True)
    ms = jnp.mean(y * y, axis=-1, keepdims=True)
    var = ms - mu * mu
    return (y - mu) * jax.lax.rsqrt(var + eps) * gamma + beta


def fused_layer_kernel(num_heads, seq, eps, fast,
                       x_ref,                     # (bb*L, D)   input rows
                       wqkv_ref, bqkv_ref,        # (1, D, 3D), (1, 1, 3D)
                       wd_ref, bd_ref,            # (1, D, D),  (1, 1, D)
                       g1_ref, be1_ref,           # (1, 1, D),  (1, 1, D)
                       w1_ref, b1_ref,            # (1, D, I),  (1, 1, I)
                       w2_ref, b2_ref,            # (1, I, D),  (1, 1, D)
                       g2_ref, be2_ref,           # (1, 1, D),  (1, 1, D)
                       o_ref,                     # (bb*L, D)
                       h_ref):                    # VMEM carry (bb*L, D) f32
    layer = pl.program_id(1)
    rows, dim = h_ref.shape
    bb = rows // seq
    hd = dim // num_heads
    cdt = wqkv_ref.dtype       # MXU operand dtype (bf16 in fast mode, else f32)

    # layer 0: load the input block into the resident activation carry.
    @pl.when(layer == 0)
    def _():
        h_ref[...] = x_ref[...].astype(jnp.float32)

    x = h_ref[...]                                           # (rows, D) f32

    # this layer's weights (single-layer blocks, streamed per grid step)
    wqkv = wqkv_ref[0]
    bqkv = bqkv_ref[0]
    wd = wd_ref[0]
    bd = bd_ref[0]
    w1 = w1_ref[0]
    b1 = b1_ref[0]
    w2 = w2_ref[0]
    b2 = b2_ref[0]

    def mm(a, w):
        return jnp.dot(a.astype(cdt), w, preferred_element_type=jnp.float32)

    # ---- QKV projection (weights pre-transposed; attn scale folded into Q) --
    qkv = mm(x, wqkv) + bqkv                                 # (rows, 3D) f32

    # ---- attention ----------------------------------------------------------
    # Scores of every (batch, head) pair stacked along sublanes -> one softmax.
    score_blocks = []
    for b in range(bb):
        r = qkv[b * seq:(b + 1) * seq]                       # (L, 3D)
        for h in range(num_heads):
            qh = r[:, h * hd:(h + 1) * hd]                   # (L, hd), pre-scaled
            kh = r[:, dim + h * hd:dim + (h + 1) * hd]       # (L, hd)
            # q @ k^T without materializing a transpose: contract dim 1 with 1.
            score_blocks.append(
                jax.lax.dot_general(qh.astype(cdt), kh.astype(cdt),
                                    (((1,), (1,)), ((), ())),
                                    preferred_element_type=jnp.float32))
    if len(score_blocks) == 1:
        s = score_blocks[0]
    else:
        s = jnp.concatenate(score_blocks, axis=0)            # (bb*H*L, L)

    # single softmax chain for all (batch, head) blocks
    s = s - jnp.max(s, axis=-1, keepdims=True)
    p = jnp.exp(s)
    denom = jnp.sum(p, axis=-1, keepdims=True)
    if fast:
        p = p * pl.reciprocal(denom, approx=True)            # EUP vrcp (free slot)
    else:
        p = p / denom

    # Per-(batch, head) PV matmul; the dense projection is folded per head via
    # the matching row-slice of Wd, so head outputs are never re-concatenated
    # along lanes.
    attn_rows = []
    for b in range(bb):
        r = qkv[b * seq:(b + 1) * seq]
        a_b = None
        for h in range(num_heads):
            blk = b * num_heads + h
            p_bh = p[blk * seq:(blk + 1) * seq]                          # (L, L)
            vh = r[:, 2 * dim + h * hd:2 * dim + (h + 1) * hd]          # (L, hd)
            o_h = jnp.dot(p_bh.astype(cdt), vh.astype(cdt),
                          preferred_element_type=jnp.float32)           # (L, hd)
            d_h = jnp.dot(o_h.astype(cdt), wd[h * hd:(h + 1) * hd, :],
                          preferred_element_type=jnp.float32)           # (L, D)
            a_b = d_h if a_b is None else a_b + d_h
        attn_rows.append(a_b)
    a = attn_rows[0] if bb == 1 else jnp.concatenate(attn_rows, axis=0)
    a = a + bd

    # ---- output projection LN + residual ------------------------------------
    a = _layer_norm(a, g1_ref[0], be1_ref[0], eps)
    h1 = x + a                                               # (rows, D)

    # ---- MLP: fc1 -> GELU -> fc2, LayerNorm, residual ------------------------
    m = mm(h1, w1) + b1
    # TODO(synk): ACT2FN[config.hidden_act] is config-dependent; exact-erf GELU
    # (PyTorch nn.GELU default) is used in precise mode, tanh-GELU in fast mode.
    m = jax.nn.gelu(m, approximate=fast)
    m = mm(m, w2) + b2
    m = _layer_norm(m, g2_ref[0], be2_ref[0], eps)

    y = h1 + m
    h_ref[...] = y                                # carry to the next layer step

    @pl.when(layer == pl.num_programs(1) - 1)
    def _():
        o_ref[...] = y.astype(o_ref.dtype)


# --------------------------- host-side weight prep --------------------------
def _tensorcores_per_chip():
    """Best-effort TensorCores-per-chip detection (megacore / v7x -> 2)."""
    try:
        kind = jax.devices()[0].device_kind.lower()
    except Exception:
        return 1
    return 2 if any(t in kind for t in ("v2", "v3", "v4", "v5p", "7")) else 1


def pack_params(layer_params, *, fast=False):
    """Pack per-layer params ONCE at model load (hoisted out of the step path).

    Weights are stacked along a leading layer axis, pre-transposed to the
    x @ W orientation, and the attention scale is folded into the Q rows of
    W_qkv / b_qkv (exact).  In fast mode the matmul weights are stored in bf16
    (f32 accumulation happens in-kernel); biases / LN params stay f32.
    """
    wdt = jnp.bfloat16 if fast else jnp.float32
    dim = layer_params[0]['wd'].shape[0]

    def stack(k):
        return jnp.stack([p[k] for p in layer_params])

    wqkv_t = jnp.stack([p['wqkv'].T for p in layer_params])          # (Nl, D, 3D)
    bqkv = stack('bqkv')                                             # (Nl, 1, 3D)
    wqkv_t = wqkv_t.at[:, :, :dim].multiply(SCALE)
    bqkv = bqkv.at[:, :, :dim].multiply(SCALE)

    wd_t = jnp.stack([p['wd'].T for p in layer_params])              # (Nl, D, D)
    w1_t = jnp.stack([p['w1'].T for p in layer_params])              # (Nl, D, I)
    w2_t = jnp.stack([p['w2'].T for p in layer_params])              # (Nl, I, D)

    return [wqkv_t.astype(wdt), bqkv,
            wd_t.astype(wdt), stack('bd'), stack('g1'), stack('be1'),
            w1_t.astype(wdt), stack('b1'),
            w2_t.astype(wdt), stack('b2'), stack('g2'), stack('be2')]


def transformer_forward(x, packed, *, fast=True, batch_block=None):
    """Full Transformer forward. x: (B, L, D) f32. One fused pallas_call."""
    b, seq, dim = x.shape
    num_layers = packed[0].shape[0]

    if batch_block is None:
        # 1-TC chips (v5e/v6e): fold the whole batch into one grid step
        # (2x sublane fill, fewer grid steps).  2-TC chips (v7x / megacore):
        # one batch element per step; the "parallel" axis is sharded per core.
        batch_block = 1 if _tensorcores_per_chip() >= 2 else b
    assert b % batch_block == 0
    nbb = b // batch_block
    rows = batch_block * seq

    x2 = x.reshape(b * seq, dim)

    data_spec = pl.BlockSpec((rows, dim), lambda bi, li: (bi, 0))

    def w_spec(w):
        nd = w.ndim - 1
        return pl.BlockSpec((1,) + w.shape[1:],
                            lambda bi, li, nd=nd: (li,) + (0,) * nd)

    kernel = functools.partial(fused_layer_kernel, H, seq, EPS, fast)

    # TODO(synk): at these toy dims (D=32) the output block stores are 32-lane
    # masked vst's; at real CogVLM D=1792 (=14*128) the block is lane-dense
    # automatically, so no wrapper-side lane repacking is done here.
    # TODO(synk): at real dims additionally pad head_dim 112->128 in the packed
    # QKV weight (lane-aligned head slices), tile the QKV/MLP matmuls over an
    # innermost "arbitrary" K axis with an f32 VMEM accumulator, and raise
    # pltpu.CompilerParams(vmem_limit_bytes=...) above the scoped default
    # (budget ~half the tile area on v7x's 64 MiB VMEM).
    out = pl.pallas_call(
        kernel,
        out_shape=jax.ShapeDtypeStruct((b * seq, dim), x.dtype),
        grid_spec=pltpu.PrefetchScalarGridSpec(
            num_scalar_prefetch=0,
            # layer axis innermost + "arbitrary": the weight blocks stream
            # layer-by-layer (next layer's weights prefetched while the current
            # one computes); the activation carry lives in VMEM scratch.
            grid=(nbb, num_layers),
            in_specs=[data_spec] + [w_spec(w) for w in packed],
            out_specs=data_spec,
            scratch_shapes=[pltpu.VMEM((rows, dim), jnp.float32)],
        ),
        compiler_params=pltpu.CompilerParams(
            dimension_semantics=("parallel", "arbitrary")),
    )(x2, *packed)
    return out.reshape(b, seq, dim)


# --------------------------- pure-JAX reference -----------------------------
def _ref_layer(x, p):
    qkv = x @ p['wqkv'].T + p['bqkv'][0]
    q, k, v = jnp.split(qkv, 3, axis=-1)                     # each (B, L, D)

    def heads(t):
        return t.reshape(B, L, H, HD).transpose(0, 2, 1, 3)  # (B, H, L, d)

    q, k, v = heads(q), heads(k), heads(v)
    s = jnp.einsum('bhqd,bhkd->bhqk', q * SCALE, k)
    p_attn = jax.nn.softmax(s, axis=-1)
    o = jnp.einsum('bhqk,bhkd->bhqd', p_attn, v).transpose(0, 2, 1, 3).reshape(B, L, D)
    o = o @ p['wd'].T + p['bd'][0]
    mu = o.mean(-1, keepdims=True); var = ((o - mu) ** 2).mean(-1, keepdims=True)
    o = (o - mu) / jnp.sqrt(var + EPS) * p['g1'][0] + p['be1'][0]
    h = x + o
    m = jax.nn.gelu(h @ p['w1'].T + p['b1'][0], approximate=False)
    m = m @ p['w2'].T + p['b2'][0]
    mu = m.mean(-1, keepdims=True); var = ((m - mu) ** 2).mean(-1, keepdims=True)
    m = (m - mu) / jnp.sqrt(var + EPS) * p['g2'][0] + p['be2'][0]
    return h + m


def _ref_forward(x, layer_params):
    for p in layer_params:
        x = _ref_layer(x, p)
    return x


# ------------------------------- param init ---------------------------------
def init_layer_params(key):
    ks = jax.random.split(key, 8)
    sc = 0.05
    return {
        'wqkv': sc * jax.random.normal(ks[0], (3 * D, D), jnp.float32),
        'bqkv': sc * jax.random.normal(ks[1], (1, 3 * D), jnp.float32),
        'wd':   sc * jax.random.normal(ks[2], (D, D), jnp.float32),
        'bd':   sc * jax.random.normal(ks[3], (1, D), jnp.float32),
        'g1':   jnp.ones((1, D), jnp.float32),
        'be1':  jnp.zeros((1, D), jnp.float32),
        'w1':   sc * jax.random.normal(ks[4], (I, D), jnp.float32),
        'b1':   sc * jax.random.normal(ks[5], (1, I), jnp.float32),
        'w2':   sc * jax.random.normal(ks[6], (D, I), jnp.float32),
        'b2':   sc * jax.random.normal(ks[7], (1, D), jnp.float32),
        'g2':   jnp.ones((1, D), jnp.float32),
        'be2':  jnp.zeros((1, D), jnp.float32),
    }


if __name__ == "__main__":
    key = jax.random.PRNGKey(0)
    key, xkey = jax.random.split(key)
    x = jax.random.normal(xkey, (B, L, D), jnp.float32)

    layer_keys = jax.random.split(key, NUM_LAYERS)
    layer_params = [init_layer_params(k) for k in layer_keys]

    # TODO(synk): xformers BlockDiagonalMask multi-image packing is not modeled;
    # each batch element attends fully within its own sequence (eval-mode
    # dropout is identity).
    ref = _ref_forward(x, layer_params)

    # pack once at "model load", outside the jitted per-step path
    packed_fast = pack_params(layer_params, fast=True)       # bf16 MXU weights
    packed_precise = pack_params(layer_params, fast=False)   # f32 weights

    # fast path: bf16 MXU operands, approx reciprocal, tanh-GELU
    fwd_fast = jax.jit(functools.partial(transformer_forward, fast=True))
    out_fast = jax.block_until_ready(fwd_fast(x, packed_fast))
    assert out_fast.shape == (B, L, D)
    rel = float(jnp.linalg.norm(out_fast - ref) / jnp.linalg.norm(ref))
    assert rel < 5e-2, f"fast-mode (bf16/approx) mismatch vs reference: {rel:.4f}"

    # precise path: f32 MXU operands, exact reciprocal, erf-GELU
    fwd_precise = jax.jit(functools.partial(transformer_forward, fast=False))
    out_precise = jax.block_until_ready(fwd_precise(x, packed_precise))
    assert jnp.allclose(out_precise, ref, atol=1e-4, rtol=1e-4), \
        "precise-mode mismatch vs reference"

    print("KERNEL_OK")
</pallas_src>

<mosaic_0001>
module attributes {stable_mosaic.version = 11 : i64} {
  func.func @fused_layer_kernel(%arg0: i32, %arg1: i32, %arg2: memref<16x32xf32, #tpu.memory_space<vmem>>, %arg3: memref<1x32x96xbf16, #tpu.memory_space<vmem>>, %arg4: memref<1x1x96xf32, #tpu.memory_space<vmem>>, %arg5: memref<1x32x32xbf16, #tpu.memory_space<vmem>>, %arg6: memref<1x1x32xf32, #tpu.memory_space<vmem>>, %arg7: memref<1x1x32xf32, #tpu.memory_space<vmem>>, %arg8: memref<1x1x32xf32, #tpu.memory_space<vmem>>, %arg9: memref<1x32x64xbf16, #tpu.memory_space<vmem>>, %arg10: memref<1x1x64xf32, #tpu.memory_space<vmem>>, %arg11: memref<1x64x32xbf16, #tpu.memory_space<vmem>>, %arg12: memref<1x1x32xf32, #tpu.memory_space<vmem>>, %arg13: memref<1x1x32xf32, #tpu.memory_space<vmem>>, %arg14: memref<1x1x32xf32, #tpu.memory_space<vmem>>, %arg15: memref<16x32xf32, #tpu.memory_space<vmem>>, %arg16: memref<16x32xf32, #tpu.memory_space<vmem>>) attributes {dimension_semantics = [#tpu.dimension_semantics<parallel>, #tpu.dimension_semantics<arbitrary>], iteration_bounds = array<i64: 1, 2>, scalar_prefetch = 0 : i64, scratch_operands = 1 : i64, tpu.core_type = #tpu.core_type<tc>, window_params = [{transform_indices = @transform_0, window_bounds = array<i64: 16, 32>}, {transform_indices = @transform_1, window_bounds = array<i64: 1, 32, 96>}, {transform_indices = @transform_2, window_bounds = array<i64: 1, 1, 96>}, {transform_indices = @transform_3, window_bounds = array<i64: 1, 32, 32>}, {transform_indices = @transform_4, window_bounds = array<i64: 1, 1, 32>}, {transform_indices = @transform_5, window_bounds = array<i64: 1, 1, 32>}, {transform_indices = @transform_6, window_bounds = array<i64: 1, 1, 32>}, {transform_indices = @transform_7, window_bounds = array<i64: 1, 32, 64>}, {transform_indices = @transform_8, window_bounds = array<i64: 1, 1, 64>}, {transform_indices = @transform_9, window_bounds = array<i64: 1, 64, 32>}, {transform_indices = @transform_10, window_bounds = array<i64: 1, 1, 32>}, {transform_indices = @transform_11, window_bounds = array<i64: 1, 1, 32>}, {transform_indices = @transform_12, window_bounds = array<i64: 1, 1, 32>}, {transform_indices = @transform_13, window_bounds = array<i64: 16, 32>}]} {
    %c0_i32 = arith.constant 0 : i32
    %0 = arith.cmpi eq, %arg1, %c0_i32 : i32
    %1 = arith.extui %0 : i1 to i32
    %c0_i32_0 = arith.constant 0 : i32
    %2 = arith.cmpi ne, %1, %c0_i32_0 : i32
    scf.if %2 {
      %c0_83 = arith.constant 0 : index
      %c0_84 = arith.constant 0 : index
      %231 = vector.load %arg2[%c0_83, %c0_84] : memref<16x32xf32, #tpu.memory_space<vmem>>, vector<16x32xf32>
      %c0_85 = arith.constant 0 : index
      %c0_86 = arith.constant 0 : index
      %232 = vector.load %arg16[%c0_85, %c0_86] : memref<16x32xf32, #tpu.memory_space<vmem>>, vector<16x32xf32>
      tpu.vector_store %arg16[%c0_85, %c0_86], %231 {strides = array<i32>} : memref<16x32xf32, #tpu.memory_space<vmem>>, vector<16x32xf32>,
    } else {
    }
    %c0 = arith.constant 0 : index
    %c0_1 = arith.constant 0 : index
    %3 = vector.load %arg16[%c0, %c0_1] : memref<16x32xf32, #tpu.memory_space<vmem>>, vector<16x32xf32>
    %c0_2 = arith.constant 0 : index
    %c0_3 = arith.constant 0 : index
    %c0_4 = arith.constant 0 : index
    %4 = vector.load %arg3[%c0_2, %c0_3, %c0_4] : memref<1x32x96xbf16, #tpu.memory_space<vmem>>, vector<1x32x96xbf16>
    %5 = vector.shape_cast %4 : vector<1x32x96xbf16> to vector<32x96xbf16>
    %c0_5 = arith.constant 0 : index
    %c0_6 = arith.constant 0 : index
    %c0_7 = arith.constant 0 : index
    %6 = vector.load %arg4[%c0_5, %c0_6, %c0_7] : memref<1x1x96xf32, #tpu.memory_space<vmem>>, vector<1x1x96xf32>
    %7 = vector.shape_cast %6 : vector<1x1x96xf32> to vector<1x96xf32>
    %c0_8 = arith.constant 0 : index
    %c0_9 = arith.constant 0 : index
    %c0_10 = arith.constant 0 : index
    %8 = vector.load %arg5[%c0_8, %c0_9, %c0_10] : memref<1x32x32xbf16, #tpu.memory_space<vmem>>, vector<1x32x32xbf16>
    %9 = vector.shape_cast %8 : vector<1x32x32xbf16> to vector<32x32xbf16>
    %c0_11 = arith.constant 0 : index
    %c0_12 = arith.constant 0 : index
    %c0_13 = arith.constant 0 : index
    %10 = vector.load %arg6[%c0_11, %c0_12, %c0_13] : memref<1x1x32xf32, #tpu.memory_space<vmem>>, vector<1x1x32xf32>
    %11 = vector.shape_cast %10 : vector<1x1x32xf32> to vector<1x32xf32>
    %c0_14 = arith.constant 0 : index
    %c0_15 = arith.constant 0 : index
    %c0_16 = arith.constant 0 : index
    %12 = vector.load %arg9[%c0_14, %c0_15, %c0_16] : memref<1x32x64xbf16, #tpu.memory_space<vmem>>, vector<1x32x64xbf16>
    %13 = vector.shape_cast %12 : vector<1x32x64xbf16> to vector<32x64xbf16>
    %c0_17 = arith.constant 0 : index
    %c0_18 = arith.constant 0 : index
    %c0_19 = arith.constant 0 : index
    %14 = vector.load %arg10[%c0_17, %c0_18, %c0_19] : memref<1x1x64xf32, #tpu.memory_space<vmem>>, vector<1x1x64xf32>
    %15 = vector.shape_cast %14 : vector<1x1x64xf32> to vector<1x64xf32>
    %c0_20 = arith.constant 0 : index
    %c0_21 = arith.constant 0 : index
    %c0_22 = arith.constant 0 : index
    %16 = vector.load %arg11[%c0_20, %c0_21, %c0_22] : memref<1x64x32xbf16, #tpu.memory_space<vmem>>, vector<1x64x32xbf16>
    %17 = vector.shape_cast %16 : vector<1x64x32xbf16> to vector<64x32xbf16>
    %c0_23 = arith.constant 0 : index
    %c0_24 = arith.constant 0 : index
    %c0_25 = arith.constant 0 : index
    %18 = vector.load %arg12[%c0_23, %c0_24, %c0_25] : memref<1x1x32xf32, #tpu.memory_space<vmem>>, vector<1x1x32xf32>
    %19 = vector.shape_cast %18 : vector<1x1x32xf32> to vector<1x32xf32>
    %20 = arith.truncf %3 : vector<16x32xf32> to vector<16x32xbf16>
    %cst = arith.constant dense<0.000000e+00> : vector<16x96xf32>
    %21 = tpu.matmul %20, %5, %cst {dimension_numbers = #tpu.dot_dimension_numbers<[1], [0], [0], [1], [0, 0, 1, 1], [], []>} : vector<16x32xbf16>, vector<32x96xbf16>, vector<16x96xf32> -> vector<16x96xf32>
    %22 = vector.broadcast %7 : vector<1x96xf32> to vector<16x96xf32>
    %23 = arith.addf %21, %22 : vector<16x96xf32>
    %24 = vector.extract_strided_slice %23 {offsets = [0, 0], sizes = [8, 96], strides = [1, 1]} : vector<16x96xf32> to vector<8x96xf32>
    %25 = vector.extract_strided_slice %24 {offsets = [0, 0], sizes = [8, 8], strides = [1, 1]} : vector<8x96xf32> to vector<8x8xf32>
    %26 = vector.extract_strided_slice %24 {offsets = [0, 32], sizes = [8, 8], strides = [1, 1]} : vector<8x96xf32> to vector<8x8xf32>
    %27 = arith.truncf %25 : vector<8x8xf32> to vector<8x8xbf16>
    %28 = arith.truncf %26 : vector<8x8xf32> to vector<8x8xbf16>
    %cst_26 = arith.constant dense<0.000000e+00> : vector<8x8xf32>
    %29 = tpu.matmul %27, %28, %cst_26 {dimension_numbers = #tpu.dot_dimension_numbers<[1], [1], [0], [0], [0, 0, 1, 0], [], []>} : vector<8x8xbf16>, vector<8x8xbf16>, vector<8x8xf32> -> vector<8x8xf32>
    %30 = vector.extract_strided_slice %24 {offsets = [0, 8], sizes = [8, 8], strides = [1, 1]} : vector<8x96xf32> to vector<8x8xf32>
    %31 = vector.extract_strided_slice %24 {offsets = [0, 40], sizes = [8, 8], strides = [1, 1]} : vector<8x96xf32> to vector<8x8xf32>
    %32 = arith.truncf %30 : vector<8x8xf32> to vector<8x8xbf16>
    %33 = arith.truncf %31 : vector<8x8xf32> to vector<8x8xbf16>
    %cst_27 = arith.constant dense<0.000000e+00> : vector<8x8xf32>
    %34 = tpu.matmul %32, %33, %cst_27 {dimension_numbers = #tpu.dot_dimension_numbers<[1], [1], [0], [0], [0, 0, 1, 0], [], []>} : vector<8x8xbf16>, vector<8x8xbf16>, vector<8x8xf32> -> vector<8x8xf32>
    %35 = vector.extract_strided_slice %24 {offsets = [0, 16], sizes = [8, 8], strides = [1, 1]} : vector<8x96xf32> to vector<8x8xf32>
    %36 = vector.extract_strided_slice %24 {offsets = [0, 48], sizes = [8, 8], strides = [1, 1]} : vector<8x96xf32> to vector<8x8xf32>
    %37 = arith.truncf %35 : vector<8x8xf32> to vector<8x8xbf16>
    %38 = arith.truncf %36 : vector<8x8xf32> to vector<8x8xbf16>
    %cst_28 = arith.constant dense<0.000000e+00> : vector<8x8xf32>
    %39 = tpu.matmul %37, %38, %cst_28 {dimension_numbers = #tpu.dot_dimension_numbers<[1], [1], [0], [0], [0, 0, 1, 0], [], []>} : vector<8x8xbf16>, vector<8x8xbf16>, vector<8x8xf32> -> vector<8x8xf32>
    %40 = vector.extract_strided_slice %24 {offsets = [0, 24], sizes = [8, 8], strides = [1, 1]} : vector<8x96xf32> to vector<8x8xf32>
    %41 = vector.extract_strided_slice %24 {offsets = [0, 56], sizes = [8, 8], strides = [1, 1]} : vector<8x96xf32> to vector<8x8xf32>
    %42 = arith.truncf %40 : vector<8x8xf32> to vector<8x8xbf16>
    %43 = arith.truncf %41 : vector<8x8xf32> to vector<8x8xbf16>
    %cst_29 = arith.constant dense<0.000000e+00> : vector<8x8xf32>
    %44 = tpu.matmul %42, %43, %cst_29 {dimension_numbers = #tpu.dot_dimension_numbers<[1], [1], [0], [0], [0, 0, 1, 0], [], []>} : vector<8x8xbf16>, vector<8x8xbf16>, vector<8x8xf32> -> vector<8x8xf32>
    %45 = vector.extract_strided_slice %23 {offsets = [8, 0], sizes = [8, 96], strides = [1, 1]} : vector<16x96xf32> to vector<8x96xf32>
    %46 = vector.extract_strided_slice %45 {offsets = [0, 0], sizes = [8, 8], strides = [1, 1]} : vector<8x96xf32> to vector<8x8xf32>
    %47 = vector.extract_strided_slice %45 {offsets = [0, 32], sizes = [8, 8], strides = [1, 1]} : vector<8x96xf32> to vector<8x8xf32>
    %48 = arith.truncf %46 : vector<8x8xf32> to vector<8x8xbf16>
    %49 = arith.truncf %47 : vector<8x8xf32> to vector<8x8xbf16>
    %cst_30 = arith.constant dense<0.000000e+00> : vector<8x8xf32>
    %50 = tpu.matmul %48, %49, %cst_30 {dimension_numbers = #tpu.dot_dimension_numbers<[1], [1], [0], [0], [0, 0, 1, 0], [], []>} : vector<8x8xbf16>, vector<8x8xbf16>, vector<8x8xf32> -> vector<8x8xf32>
    %51 = vector.extract_strided_slice %45 {offsets = [0, 8], sizes = [8, 8], strides = [1, 1]} : vector<8x96xf32> to vector<8x8xf32>
    %52 = vector.extract_strided_slice %45 {offsets = [0, 40], sizes = [8, 8], strides = [1, 1]} : vector<8x96xf32> to vector<8x8xf32>
    %53 = arith.truncf %51 : vector<8x8xf32> to vector<8x8xbf16>
    %54 = arith.truncf %52 : vector<8x8xf32> to vector<8x8xbf16>
    %cst_31 = arith.constant dense<0.000000e+00> : vector<8x8xf32>
    %55 = tpu.matmul %53, %54, %cst_31 {dimension_numbers = #tpu.dot_dimension_numbers<[1], [1], [0], [0], [0, 0, 1, 0], [], []>} : vector<8x8xbf16>, vector<8x8xbf16>, vector<8x8xf32> -> vector<8x8xf32>
    %56 = vector.extract_strided_slice %45 {offsets = [0, 16], sizes = [8, 8], strides = [1, 1]} : vector<8x96xf32> to vector<8x8xf32>
    %57 = vector.extract_strided_slice %45 {offsets = [0, 48], sizes = [8, 8], strides = [1, 1]} : vector<8x96xf32> to vector<8x8xf32>
    %58 = arith.truncf %56 : vector<8x8xf32> to vector<8x8xbf16>
    %59 = arith.truncf %57 : vector<8x8xf32> to vector<8x8xbf16>
    %cst_32 = arith.constant dense<0.000000e+00> : vector<8x8xf32>
    %60 = tpu.matmul %58, %59, %cst_32 {dimension_numbers = #tpu.dot_dimension_numbers<[1], [1], [0], [0], [0, 0, 1, 0], [], []>} : vector<8x8xbf16>, vector<8x8xbf16>, vector<8x8xf32> -> vector<8x8xf32>
    %61 = vector.extract_strided_slice %45 {offsets = [0, 24], sizes = [8, 8], strides = [1, 1]} : vector<8x96xf32> to vector<8x8xf32>
    %62 = vector.extract_strided_slice %45 {offsets = [0, 56], sizes = [8, 8], strides = [1, 1]} : vector<8x96xf32> to vector<8x8xf32>
    %63 = arith.truncf %61 : vector<8x8xf32> to vector<8x8xbf16>
    %64 = arith.truncf %62 : vector<8x8xf32> to vector<8x8xbf16>
    %cst_33 = arith.constant dense<0.000000e+00> : vector<8x8xf32>
    %65 = tpu.matmul %63, %64, %cst_33 {dimension_numbers = #tpu.dot_dimension_numbers<[1], [1], [0], [0], [0, 0, 1, 0], [], []>} : vector<8x8xbf16>, vector<8x8xbf16>, vector<8x8xf32> -> vector<8x8xf32>
    %66 = tpu.concatenate %29, %34, %39, %44, %50, %55, %60, %65 in 0 : vector<8x8xf32>, vector<8x8xf32>, vector<8x8xf32>, vector<8x8xf32>, vector<8x8xf32>, vector<8x8xf32>, vector<8x8xf32>, vector<8x8xf32> -> vector<64x8xf32>
    %cst_34 = arith.constant dense<0xFF800000> : vector<64xf32>
    %67 = vector.multi_reduction <maximumf>, %66, %cst_34 [1] : vector<64x8xf32> to vector<64xf32>
    %68 = vector.shape_cast %67 : vector<64xf32> to vector<64x1xf32>
    %69 = vector.broadcast %68 : vector<64x1xf32> to vector<64x8xf32>
    %70 = arith.subf %66, %69 : vector<64x8xf32>
    %71 = math.exp %70 : vector<64x8xf32>
    %cst_35 = arith.constant dense<0.000000e+00> : vector<64xf32>
    %72 = vector.multi_reduction <add>, %71, %cst_35 [1] : vector<64x8xf32> to vector<64xf32>
    %73 = vector.shape_cast %72 : vector<64xf32> to vector<64x1xf32>
    %74 = tpu.reciprocal %73 {approx = true} : vector<64x1xf32> -> vector<64x1xf32>
    %75 = vector.broadcast %74 : vector<64x1xf32> to vector<64x8xf32>
    %76 = arith.mulf %71, %75 : vector<64x8xf32>
    %77 = vector.extract_strided_slice %23 {offsets = [0, 0], sizes = [8, 96], strides = [1, 1]} : vector<16x96xf32> to vector<8x96xf32>
    %78 = vector.extract_strided_slice %76 {offsets = [0, 0], sizes = [8, 8], strides = [1, 1]} : vector<64x8xf32> to vector<8x8xf32>
    %79 = vector.extract_strided_slice %77 {offsets = [0, 64], sizes = [8, 8], strides = [1, 1]} : vector<8x96xf32> to vector<8x8xf32>
    %80 = arith.truncf %78 : vector<8x8xf32> to vector<8x8xbf16>
    %81 = arith.truncf %79 : vector<8x8xf32> to vector<8x8xbf16>
    %cst_36 = arith.constant dense<0.000000e+00> : vector<8x8xf32>
    %82 = tpu.matmul %80, %81, %cst_36 {dimension_numbers = #tpu.dot_dimension_numbers<[1], [0], [0], [1], [0, 0, 1, 1], [], []>} : vector<8x8xbf16>, vector<8x8xbf16>, vector<8x8xf32> -> vector<8x8xf32>
    %83 = arith.truncf %82 : vector<8x8xf32> to vector<8x8xbf16>
    %84 = vector.extract_strided_slice %9 {offsets = [0, 0], sizes = [8, 32], strides = [1, 1]} : vector<32x32xbf16> to vector<8x32xbf16>
    %cst_37 = arith.constant dense<0.000000e+00> : vector<8x32xf32>
    %85 = tpu.matmul %83, %84, %cst_37 {dimension_numbers = #tpu.dot_dimension_numbers<[1], [0], [0], [1], [0, 0, 1, 1], [], []>} : vector<8x8xbf16>, vector<8x32xbf16>, vector<8x32xf32> -> vector<8x32xf32>
    %86 = vector.extract_strided_slice %76 {offsets = [8, 0], sizes = [8, 8], strides = [1, 1]} : vector<64x8xf32> to vector<8x8xf32>
    %87 = vector.extract_strided_slice %77 {offsets = [0, 72], sizes = [8, 8], strides = [1, 1]} : vector<8x96xf32> to vector<8x8xf32>
    %88 = arith.truncf %86 : vector<8x8xf32> to vector<8x8xbf16>
    %89 = arith.truncf %87 : vector<8x8xf32> to vector<8x8xbf16>
    %cst_38 = arith.constant dense<0.000000e+00> : vector<8x8xf32>
    %90 = tpu.matmul %88, %89, %cst_38 {dimension_numbers = #tpu.dot_dimension_numbers<[1], [0], [0], [1], [0, 0, 1, 1], [], []>} : vector<8x8xbf16>, vector<8x8xbf16>, vector<8x8xf32> -> vector<8x8xf32>
    %91 = arith.truncf %90 : vector<8x8xf32> to vector<8x8xbf16>
    %92 = vector.extract_strided_slice %9 {offsets = [8, 0], sizes = [8, 32], strides = [1, 1]} : vector<32x32xbf16> to vector<8x32xbf16>
    %cst_39 = arith.constant dense<0.000000e+00> : vector<8x32xf32>
    %93 = tpu.matmul %91, %92, %cst_39 {dimension_numbers = #tpu.dot_dimension_numbers<[1], [0], [0], [1], [0, 0, 1, 1], [], []>} : vector<8x8xbf16>, vector<8x32xbf16>, vector<8x32xf32> -> vector<8x32xf32>
    %94 = arith.addf %85, %93 : vector<8x32xf32>
    %95 = vector.extract_strided_slice %76 {offsets = [16, 0], sizes = [8, 8], strides = [1, 1]} : vector<64x8xf32> to vector<8x8xf32>
    %96 = vector.extract_strided_slice %77 {offsets = [0, 80], sizes = [8, 8], strides = [1, 1]} : vector<8x96xf32> to vector<8x8xf32>
    %97 = arith.truncf %95 : vector<8x8xf32> to vector<8x8xbf16>
    %98 = arith.truncf %96 : vector<8x8xf32> to vector<8x8xbf16>
    %cst_40 = arith.constant dense<0.000000e+00> : vector<8x8xf32>
    %99 = tpu.matmul %97, %98, %cst_40 {dimension_numbers = #tpu.dot_dimension_numbers<[1], [0], [0], [1], [0, 0, 1, 1], [], []>} : vector<8x8xbf16>, vector<8x8xbf16>, vector<8x8xf32> -> vector<8x8xf32>
    %100 = arith.truncf %99 : vector<8x8xf32> to vector<8x8xbf16>
    %101 = vector.extract_strided_slice %9 {offsets = [16, 0], sizes = [8, 32], strides = [1, 1]} : vector<32x32xbf16> to vector<8x32xbf16>
    %cst_41 = arith.constant dense<0.000000e+00> : vector<8x32xf32>
    %102 = tpu.matmul %100, %101, %cst_41 {dimension_numbers = #tpu.dot_dimension_numbers<[1], [0], [0], [1], [0, 0, 1, 1], [], []>} : vector<8x8xbf16>, vector<8x32xbf16>, vector<8x32xf32> -> vector<8x32xf32>
    %103 = arith.addf %94, %102 : vector<8x32xf32>
    %104 = vector.extract_strided_slice %76 {offsets = [24, 0], sizes = [8, 8], strides = [1, 1]} : vector<64x8xf32> to vector<8x8xf32>
    %105 = vector.extract_strided_slice %77 {offsets = [0, 88], sizes = [8, 8], strides = [1, 1]} : vector<8x96xf32> to vector<8x8xf32>
    %106 = arith.truncf %104 : vector<8x8xf32> to vector<8x8xbf16>
    %107 = arith.truncf %105 : vector<8x8xf32> to vector<8x8xbf16>
    %cst_42 = arith.constant dense<0.000000e+00> : vector<8x8xf32>
    %108 = tpu.matmul %106, %107, %cst_42 {dimension_numbers = #tpu.dot_dimension_numbers<[1], [0], [0], [1], [0, 0, 1, 1], [], []>} : vector<8x8xbf16>, vector<8x8xbf16>, vector<8x8xf32> -> vector<8x8xf32>
    %109 = arith.truncf %108 : vector<8x8xf32> to vector<8x8xbf16>
    %110 = vector.extract_strided_slice %9 {offsets = [24, 0], sizes = [8, 32], strides = [1, 1]} : vector<32x32xbf16> to vector<8x32xbf16>
    %cst_43 = arith.constant dense<0.000000e+00> : vector<8x32xf32>
    %111 = tpu.matmul %109, %110, %cst_43 {dimension_numbers = #tpu.dot_dimension_numbers<[1], [0], [0], [1], [0, 0, 1, 1], [], []>} : vector<8x8xbf16>, vector<8x32xbf16>, vector<8x32xf32> -> vector<8x32xf32>
    %112 = arith.addf %103, %111 : vector<8x32xf32>
    %113 = vector.extract_strided_slice %23 {offsets = [8, 0], sizes = [8, 96], strides = [1, 1]} : vector<16x96xf32> to vector<8x96xf32>
    %114 = vector.extract_strided_slice %76 {offsets = [32, 0], sizes = [8, 8], strides = [1, 1]} : vector<64x8xf32> to vector<8x8xf32>
    %115 = vector.extract_strided_slice %113 {offsets = [0, 64], sizes = [8, 8], strides = [1, 1]} : vector<8x96xf32> to vector<8x8xf32>
    %116 = arith.truncf %114 : vector<8x8xf32> to vector<8x8xbf16>
    %117 = arith.truncf %115 : vector<8x8xf32> to vector<8x8xbf16>
    %cst_44 = arith.constant dense<0.000000e+00> : vector<8x8xf32>
    %118 = tpu.matmul %116, %117, %cst_44 {dimension_numbers = #tpu.dot_dimension_numbers<[1], [0], [0], [1], [0, 0, 1, 1], [], []>} : vector<8x8xbf16>, vector<8x8xbf16>, vector<8x8xf32> -> vector<8x8xf32>
    %119 = arith.truncf %118 : vector<8x8xf32> to vector<8x8xbf16>
    %120 = vector.extract_strided_slice %9 {offsets = [0, 0], sizes = [8, 32], strides = [1, 1]} : vector<32x32xbf16> to vector<8x32xbf16>
    %cst_45 = arith.constant dense<0.000000e+00> : vector<8x32xf32>
    %121 = tpu.matmul %119, %120, %cst_45 {dimension_numbers = #tpu.dot_dimension_numbers<[1], [0], [0], [1], [0, 0, 1, 1], [], []>} : vector<8x8xbf16>, vector<8x32xbf16>, vector<8x32xf32> -> vector<8x32xf32>
    %122 = vector.extract_strided_slice %76 {offsets = [40, 0], sizes = [8, 8], strides = [1, 1]} : vector<64x8xf32> to vector<8x8xf32>
    %123 = vector.extract_strided_slice %113 {offsets = [0, 72], sizes = [8, 8], strides = [1, 1]} : vector<8x96xf32> to vector<8x8xf32>
    %124 = arith.truncf %122 : vector<8x8xf32> to vector<8x8xbf16>
    %125 = arith.truncf %123 : vector<8x8xf32> to vector<8x8xbf16>
    %cst_46 = arith.constant dense<0.000000e+00> : vector<8x8xf32>
    %126 = tpu.matmul %124, %125, %cst_46 {dimension_numbers = #tpu.dot_dimension_numbers<[1], [0], [0], [1], [0, 0, 1, 1], [], []>} : vector<8x8xbf16>, vector<8x8xbf16>, vector<8x8xf32> -> vector<8x8xf32>
    %127 = arith.truncf %126 : vector<8x8xf32> to vector<8x8xbf16>
    %128 = vector.extract_strided_slice %9 {offsets = [8, 0], sizes = [8, 32], strides = [1, 1]} : vector<32x32xbf16> to vector<8x32xbf16>
    %cst_47 = arith.constant dense<0.000000e+00> : vector<8x32xf32>
    %129 = tpu.matmul %127, %128, %cst_47 {dimension_numbers = #tpu.dot_dimension_numbers<[1], [0], [0], [1], [0, 0, 1, 1], [], []>} : vector<8x8xbf16>, vector<8x32xbf16>, vector<8x32xf32> -> vector<8x32xf32>
    %130 = arith.addf %121, %129 : vector<8x32xf32>
    %131 = vector.extract_strided_slice %76 {offsets = [48, 0], sizes = [8, 8], strides = [1, 1]} : vector<64x8xf32> to vector<8x8xf32>
    %132 = vector.extract_strided_slice %113 {offsets = [0, 80], sizes = [8, 8], strides = [1, 1]} : vector<8x96xf32> to vector<8x8xf32>
    %133 = arith.truncf %131 : vector<8x8xf32> to vector<8x8xbf16>
    %134 = arith.truncf %132 : vector<8x8xf32> to vector<8x8xbf16>
    %cst_48 = arith.constant dense<0.000000e+00> : vector<8x8xf32>
    %135 = tpu.matmul %133, %134, %cst_48 {dimension_numbers = #tpu.dot_dimension_numbers<[1], [0], [0], [1], [0, 0, 1, 1], [], []>} : vector<8x8xbf16>, vector<8x8xbf16>, vector<8x8xf32> -> vector<8x8xf32>
    %136 = arith.truncf %135 : vector<8x8xf32> to vector<8x8xbf16>
    %137 = vector.extract_strided_slice %9 {offsets = [16, 0], sizes = [8, 32], strides = [1, 1]} : vector<32x32xbf16> to vector<8x32xbf16>
    %cst_49 = arith.constant dense<0.000000e+00> : vector<8x32xf32>
    %138 = tpu.matmul %136, %137, %cst_49 {dimension_numbers = #tpu.dot_dimension_numbers<[1], [0], [0], [1], [0, 0, 1, 1], [], []>} : vector<8x8xbf16>, vector<8x32xbf16>, vector<8x32xf32> -> vector<8x32xf32>
    %139 = arith.addf %130, %138 : vector<8x32xf32>
    %140 = vector.extract_strided_slice %76 {offsets = [56, 0], sizes = [8, 8], strides = [1, 1]} : vector<64x8xf32> to vector<8x8xf32>
    %141 = vector.extract_strided_slice %113 {offsets = [0, 88], sizes = [8, 8], strides = [1, 1]} : vector<8x96xf32> to vector<8x8xf32>
    %142 = arith.truncf %140 : vector<8x8xf32> to vector<8x8xbf16>
    %143 = arith.truncf %141 : vector<8x8xf32> to vector<8x8xbf16>
    %cst_50 = arith.constant dense<0.000000e+00> : vector<8x8xf32>
    %144 = tpu.matmul %142, %143, %cst_50 {dimension_numbers = #tpu.dot_dimension_numbers<[1], [0], [0], [1], [0, 0, 1, 1], [], []>} : vector<8x8xbf16>, vector<8x8xbf16>, vector<8x8xf32> -> vector<8x8xf32>
    %145 = arith.truncf %144 : vector<8x8xf32> to vector<8x8xbf16>
    %146 = vector.extract_strided_slice %9 {offsets = [24, 0], sizes = [8, 32], strides = [1, 1]} : vector<32x32xbf16> to vector<8x32xbf16>
    %cst_51 = arith.constant dense<0.000000e+00> : vector<8x32xf32>
    %147 = tpu.matmul %145, %146, %cst_51 {dimension_numbers = #tpu.dot_dimension_numbers<[1], [0], [0], [1], [0, 0, 1, 1], [], []>} : vector<8x8xbf16>, vector<8x32xbf16>, vector<8x32xf32> -> vector<8x32xf32>
    %148 = arith.addf %139, %147 : vector<8x32xf32>
    %149 = tpu.concatenate %112, %148 in 0 : vector<8x32xf32>, vector<8x32xf32> -> vector<16x32xf32>
    %150 = vector.broadcast %11 : vector<1x32xf32> to vector<16x32xf32>
    %151 = arith.addf %149, %150 : vector<16x32xf32>
    %c0_52 = arith.constant 0 : index
    %c0_53 = arith.constant 0 : index
    %c0_54 = arith.constant 0 : index
    %152 = vector.load %arg7[%c0_52, %c0_53, %c0_54] : memref<1x1x32xf32, #tpu.memory_space<vmem>>, vector<1x1x32xf32>
    %153 = vector.shape_cast %152 : vector<1x1x32xf32> to vector<1x32xf32>
    %c0_55 = arith.constant 0 : index
    %c0_56 = arith.constant 0 : index
    %c0_57 = arith.constant 0 : index
    %154 = vector.load %arg8[%c0_55, %c0_56, %c0_57] : memref<1x1x32xf32, #tpu.memory_space<vmem>>, vector<1x1x32xf32>
    %155 = vector.shape_cast %154 : vector<1x1x32xf32> to vector<1x32xf32>
    %cst_58 = arith.constant dense<0.000000e+00> : vector<16xf32>
    %156 = vector.multi_reduction <add>, %151, %cst_58 [1] : vector<16x32xf32> to vector<16xf32>
    %157 = vector.shape_cast %156 : vector<16xf32> to vector<16x1xf32>
    %cst_59 = arith.constant 3.200000e+01 : f32
    %158 = vector.broadcast %cst_59 : f32 to vector<16x1xf32>
    %159 = arith.divf %157, %158 : vector<16x1xf32>
    %160 = arith.mulf %151, %151 : vector<16x32xf32>
    %cst_60 = arith.constant dense<0.000000e+00> : vector<16xf32>
    %161 = vector.multi_reduction <add>, %160, %cst_60 [1] : vector<16x32xf32> to vector<16xf32>
    %162 = vector.shape_cast %161 : vector<16xf32> to vector<16x1xf32>
    %cst_61 = arith.constant 3.200000e+01 : f32
    %163 = vector.broadcast %cst_61 : f32 to vector<16x1xf32>
    %164 = arith.divf %162, %163 : vector<16x1xf32>
    %165 = arith.mulf %159, %159 : vector<16x1xf32>
    %166 = arith.subf %164, %165 : vector<16x1xf32>
    %167 = vector.broadcast %159 : vector<16x1xf32> to vector<16x32xf32>
    %168 = arith.subf %151, %167 : vector<16x32xf32>
    %cst_62 = arith.constant 9.99999997E-7 : f32
    %169 = vector.broadcast %cst_62 : f32 to vector<16x1xf32>
    %170 = arith.addf %166, %169 : vector<16x1xf32>
    %171 = math.rsqrt %170 : vector<16x1xf32>
    %172 = vector.broadcast %171 : vector<16x1xf32> to vector<16x32xf32>
    %173 = arith.mulf %168, %172 : vector<16x32xf32>
    %174 = vector.broadcast %153 : vector<1x32xf32> to vector<16x32xf32>
    %175 = arith.mulf %173, %174 : vector<16x32xf32>
    %176 = vector.broadcast %155 : vector<1x32xf32> to vector<16x32xf32>
    %177 = arith.addf %175, %176 : vector<16x32xf32>
    %178 = arith.addf %3, %177 : vector<16x32xf32>
    %179 = arith.truncf %178 : vector<16x32xf32> to vector<16x32xbf16>
    %cst_63 = arith.constant dense<0.000000e+00> : vector<16x64xf32>
    %180 = tpu.matmul %179, %13, %cst_63 {dimension_numbers = #tpu.dot_dimension_numbers<[1], [0], [0], [1], [0, 0, 1, 1], [], []>} : vector<16x32xbf16>, vector<32x64xbf16>, vector<16x64xf32> -> vector<16x64xf32>
    %181 = vector.broadcast %15 : vector<1x64xf32> to vector<16x64xf32>
    %182 = arith.addf %180, %181 : vector<16x64xf32>
    %183 = arith.mulf %182, %182 : vector<16x64xf32>
    %184 = arith.mulf %182, %183 : vector<16x64xf32>
    %cst_64 = arith.constant 4.471500e-02 : f32
    %185 = vector.broadcast %cst_64 : f32 to vector<16x64xf32>
    %186 = arith.mulf %185, %184 : vector<16x64xf32>
    %187 = arith.addf %182, %186 : vector<16x64xf32>
    %cst_65 = arith.constant 0.797884583 : f32
    %188 = vector.broadcast %cst_65 : f32 to vector<16x64xf32>
    %189 = arith.mulf %188, %187 : vector<16x64xf32>
    %190 = math.tanh %189 : vector<16x64xf32>
    %cst_66 = arith.constant 1.000000e+00 : f32
    %191 = vector.broadcast %cst_66 : f32 to vector<16x64xf32>
    %192 = arith.addf %191, %190 : vector<16x64xf32>
    %cst_67 = arith.constant 5.000000e-01 : f32
    %193 = vector.broadcast %cst_67 : f32 to vector<16x64xf32>
    %194 = arith.mulf %193, %192 : vector<16x64xf32>
    %195 = arith.mulf %182, %194 : vector<16x64xf32>
    %196 = arith.truncf %195 : vector<16x64xf32> to vector<16x64xbf16>
    %cst_68 = arith.constant dense<0.000000e+00> : vector<16x32xf32>
    %197 = tpu.matmul %196, %17, %cst_68 {dimension_numbers = #tpu.dot_dimension_numbers<[1], [0], [0], [1], [0, 0, 1, 1], [], []>} : vector<16x64xbf16>, vector<64x32xbf16>, vector<16x32xf32> -> vector<16x32xf32>
    %198 = vector.broadcast %19 : vector<1x32xf32> to vector<16x32xf32>
    %199 = arith.addf %197, %198 : vector<16x32xf32>
    %c0_69 = arith.constant 0 : index
    %c0_70 = arith.constant 0 : index
    %c0_71 = arith.constant 0 : index
    %200 = vector.load %arg13[%c0_69, %c0_70, %c0_71] : memref<1x1x32xf32, #tpu.memory_space<vmem>>, vector<1x1x32xf32>
    %201 = vector.shape_cast %200 : vector<1x1x32xf32> to vector<1x32xf32>
    %c0_72 = arith.constant 0 : index
    %c0_73 = arith.constant 0 : index
    %c0_74 = arith.constant 0 : index
    %202 = vector.load %arg14[%c0_72, %c0_73, %c0_74] : memref<1x1x32xf32, #tpu.memory_space<vmem>>, vector<1x1x32xf32>
    %203 = vector.shape_cast %202 : vector<1x1x32xf32> to vector<1x32xf32>
    %cst_75 = arith.constant dense<0.000000e+00> : vector<16xf32>
    %204 = vector.multi_reduction <add>, %199, %cst_75 [1] : vector<16x32xf32> to vector<16xf32>
    %205 = vector.shape_cast %204 : vector<16xf32> to vector<16x1xf32>
    %cst_76 = arith.constant 3.200000e+01 : f32
    %206 = vector.broadcast %cst_76 : f32 to vector<16x1xf32>
    %207 = arith.divf %205, %206 : vector<16x1xf32>
    %208 = arith.mulf %199, %199 : vector<16x32xf32>
    %cst_77 = arith.constant dense<0.000000e+00> : vector<16xf32>
    %209 = vector.multi_reduction <add>, %208, %cst_77 [1] : vector<16x32xf32> to vector<16xf32>
    %210 = vector.shape_cast %209 : vector<16xf32> to vector<16x1xf32>
    %cst_78 = arith.constant 3.200000e+01 : f32
    %211 = vector.broadcast %cst_78 : f32 to vector<16x1xf32>
    %212 = arith.divf %210, %211 : vector<16x1xf32>
    %213 = arith.mulf %207, %207 : vector<16x1xf32>
    %214 = arith.subf %212, %213 : vector<16x1xf32>
    %215 = vector.broadcast %207 : vector<16x1xf32> to vector<16x32xf32>
    %216 = arith.subf %199, %215 : vector<16x32xf32>
    %cst_79 = arith.constant 9.99999997E-7 : f32
    %217 = vector.broadcast %cst_79 : f32 to vector<16x1xf32>
    %218 = arith.addf %214, %217 : vector<16x1xf32>
    %219 = math.rsqrt %218 : vector<16x1xf32>
    %220 = vector.broadcast %219 : vector<16x1xf32> to vector<16x32xf32>
    %221 = arith.mulf %216, %220 : vector<16x32xf32>
    %222 = vector.broadcast %201 : vector<1x32xf32> to vector<16x32xf32>
    %223 = arith.mulf %221, %222 : vector<16x32xf32>
    %224 = vector.broadcast %203 : vector<1x32xf32> to vector<16x32xf32>
    %225 = arith.addf %223, %224 : vector<16x32xf32>
    %226 = arith.addf %178, %225 : vector<16x32xf32>
    %c0_80 = arith.constant 0 : index
    %c0_81 = arith.constant 0 : index
    %227 = vector.load %arg16[%c0_80, %c0_81] : memref<16x32xf32, #tpu.memory_space<vmem>>, vector<16x32xf32>
    tpu.vector_store %arg16[%c0_80, %c0_81], %226 {strides = array<i32>} : memref<16x32xf32, #tpu.memory_space<vmem>>, vector<16x32xf32>,
    %c1_i32 = arith.constant 1 : i32
    %228 = arith.cmpi eq, %arg1, %c1_i32 : i32
    %229 = arith.extui %228 : i1 to i32
    %c0_i32_82 = arith.constant 0 : i32
    %230 = arith.cmpi ne, %229, %c0_i32_82 : i32
    scf.if %230 {
      %c0_83 = arith.constant 0 : index
      %c0_84 = arith.constant 0 : index
      %231 = vector.load %arg15[%c0_83, %c0_84] : memref<16x32xf32, #tpu.memory_space<vmem>>, vector<16x32xf32>
      tpu.vector_store %arg15[%c0_83, %c0_84], %226 {strides = array<i32>} : memref<16x32xf32, #tpu.memory_space<vmem>>, vector<16x32xf32>,
    } else {
    }
    return
  }
  func.func @transform_0(%arg0: i32, %arg1: i32) -> (i32, i32) {
    %c0_i32 = arith.constant 0 : i32
    %c0_i32_0 = arith.constant 0 : i32
    return %arg0, %c0_i32 : i32, i32
  }
  func.func @transform_1(%arg0: i32, %arg1: i32) -> (i32, i32, i32) {
    %c0_i32 = arith.constant 0 : i32
    %c0_i32_0 = arith.constant 0 : i32
    %c0_i32_1 = arith.constant 0 : i32
    return %arg1, %c0_i32, %c0_i32_0 : i32, i32, i32
  }
  func.func @transform_2(%arg0: i32, %arg1: i32) -> (i32, i32, i32) {
    %c0_i32 = arith.constant 0 : i32
    %c0_i32_0 = arith.constant 0 : i32
    %c0_i32_1 = arith.constant 0 : i32
    return %arg1, %c0_i32, %c0_i32_0 : i32, i32, i32
  }
  func.func @transform_3(%arg0: i32, %arg1: i32) -> (i32, i32, i32) {
    %c0_i32 = arith.constant 0 : i32
    %c0_i32_0 = arith.constant 0 : i32
    %c0_i32_1 = arith.constant 0 : i32
    return %arg1, %c0_i32, %c0_i32_0 : i32, i32, i32
  }
  func.func @transform_4(%arg0: i32, %arg1: i32) -> (i32, i32, i32) {
    %c0_i32 = arith.constant 0 : i32
    %c0_i32_0 = arith.constant 0 : i32
    %c0_i32_1 = arith.constant 0 : i32
    return %arg1, %c0_i32, %c0_i32_0 : i32, i32, i32
  }
  func.func @transform_5(%arg0: i32, %arg1: i32) -> (i32, i32, i32) {
    %c0_i32 = arith.constant 0 : i32
    %c0_i32_0 = arith.constant 0 : i32
    %c0_i32_1 = arith.constant 0 : i32
    return %arg1, %c0_i32, %c0_i32_0 : i32, i32, i32
  }
  func.func @transform_6(%arg0: i32, %arg1: i32) -> (i32, i32, i32) {
    %c0_i32 = arith.constant 0 : i32
    %c0_i32_0 = arith.constant 0 : i32
    %c0_i32_1 = arith.constant 0 : i32
    return %arg1, %c0_i32, %c0_i32_0 : i32, i32, i32
  }
  func.func @transform_7(%arg0: i32, %arg1: i32) -> (i32, i32, i32) {
    %c0_i32 = arith.constant 0 : i32
    %c0_i32_0 = arith.constant 0 : i32
    %c0_i32_1 = arith.constant 0 : i32
    return %arg1, %c0_i32, %c0_i32_0 : i32, i32, i32
  }
  func.func @transform_8(%arg0: i32, %arg1: i32) -> (i32, i32, i32) {
    %c0_i32 = arith.constant 0 : i32
    %c0_i32_0 = arith.constant 0 : i32
    %c0_i32_1 = arith.constant 0 : i32
    return %arg1, %c0_i32, %c0_i32_0 : i32, i32, i32
  }
  func.func @transform_9(%arg0: i32, %arg1: i32) -> (i32, i32, i32) {
    %c0_i32 = arith.constant 0 : i32
    %c0_i32_0 = arith.constant 0 : i32
    %c0_i32_1 = arith.constant 0 : i32
    return %arg1, %c0_i32, %c0_i32_0 : i32, i32, i32
  }
  func.func @transform_10(%arg0: i32, %arg1: i32) -> (i32, i32, i32) {
    %c0_i32 = arith.constant 0 : i32
    %c0_i32_0 = arith.constant 0 : i32
    %c0_i32_1 = arith.constant 0 : i32
    return %arg1, %c0_i32, %c0_i32_0 : i32, i32, i32
  }
  func.func @transform_11(%arg0: i32, %arg1: i32) -> (i32, i32, i32) {
    %c0_i32 = arith.constant 0 : i32
    %c0_i32_0 = arith.constant 0 : i32
    %c0_i32_1 = arith.constant 0 : i32
    return %arg1, %c0_i32, %c0_i32_0 : i32, i32, i32
  }
  func.func @transform_12(%arg0: i32, %arg1: i32) -> (i32, i32, i32) {
    %c0_i32 = arith.constant 0 : i32
    %c0_i32_0 = arith.constant 0 : i32
    %c0_i32_1 = arith.constant 0 : i32
    return %arg1, %c0_i32, %c0_i32_0 : i32, i32, i32
  }
  func.func @transform_13(%arg0: i32, %arg1: i32) -> (i32, i32) {
    %c0_i32 = arith.constant 0 : i32
    %c0_i32_0 = arith.constant 0 : i32
    return %arg0, %c0_i32 : i32, i32
  }
}

</mosaic_0001>

<llo_original>
// kernel: transformer_forward.1
$region0: #{transformer_forward.1}
  #allocation0 [shape = 'u32[]', space=smem, size = 0x4, offset = 0x4, fixed_abs, tag = 'smem constant byte address 0x4 - core index']
  #allocation1 [shape = 'u32[144,128]{1,0:T(1,128)}', space=vmem, size = 0x12000, scoped, tag = 'internal scratch']
  #allocation2 [shape = 'f32[16,32]{1,0:T(8,128)}', space=vmem, size = 0x2000, scoped, tag = 'scratch operand']
  %s0 = inlined_call_operand.hbm [shape: f32[16,32], index: 0, kind: input, shape index: {}]
  %s1 = inlined_call_operand.vmem [shape: bf16[2,32,96], index: 1, kind: input, shape index: {}]
  %s2 = inlined_call_operand.vmem [shape: f32[2,1,96], index: 2, kind: input, shape index: {}]
  %s3 = inlined_call_operand.vmem [shape: bf16[2,32,32], index: 3, kind: input, shape index: {}]
  %s4 = inlined_call_operand.vmem [shape: f32[2,1,32], index: 4, kind: input, shape index: {}]
  %s5 = inlined_call_operand.vmem [shape: f32[2,1,32], index: 5, kind: input, shape index: {}]
  %s6 = inlined_call_operand.vmem [shape: f32[2,1,32], index: 6, kind: input, shape index: {}]
  %s7 = inlined_call_operand.vmem [shape: bf16[2,32,64], index: 7, kind: input, shape index: {}]
  %s8 = inlined_call_operand.vmem [shape: f32[2,1,64], index: 8, kind: input, shape index: {}]
  %s9 = inlined_call_operand.vmem [shape: bf16[2,64,32], index: 9, kind: input, shape index: {}]
  %s10 = inlined_call_operand.vmem [shape: f32[2,1,32], index: 10, kind: input, shape index: {}]
  %s11 = inlined_call_operand.vmem [shape: f32[2,1,32], index: 11, kind: input, shape index: {}]
  %s12 = inlined_call_operand.vmem [shape: f32[2,1,32], index: 12, kind: input, shape index: {}]
  %s13 = inlined_call_operand.hbm [shape: f32[16,32], index: 13, kind: output, shape index: {}]
  %s14 = sld [smem:[#allocation0]]
  $region97: #{transformer_forward.1} parent=0
    _
  %s16 = ssub.s32 1, %s14
  %s17 = scalar_select 0, %s16, %s14
  $region1: #{transformer_forward.1} parent=0
    #allocation3 [shape = 'u8[8192]{0}', space=vmem, size = 0x2000, scoped, tag = 'input window, operand 0, single buffered']
    #allocation4 [shape = 's32[2]{0}', space=sflag, size = 0x8, scoped, tag = 'scoped memory for transformer_forward.1']
    #allocation5 [shape = 's32[2]{0}', space=sflag, size = 0x8, scoped, tag = 'scoped memory for transformer_forward.1']
    #allocation6 [shape = 'u8[8192]{0}', space=vmem, size = 0x2000, scoped, tag = 'output window, operand 0, single buffered']
    %18 = vsyncpa [#allocation4], 0
    %19 = vsyncpa [#allocation5], 0
    loop: start=0, step=1, limit=4
    $region2: #{transformer_forward.1} parent=1 // loop_pre_header
      _
    $region3: #{transformer_forward.1} parent=1 // loop_header
      %s21 = sphi 0, %s25
      %p22 = scmp.ge.s32.totalorder %s21, 4
      %s28 = sphi 0, %s40
      %s29 = sphi 0, %s36
      %s30 = sphi 0, %s28
      %s31 = sphi 0, %s29
      %s32 = sphi 0, %s30
      %s33 = sphi 0, %s31
      %s43 = sphi 0, %s45
      %s46 = sphi 0, %s43
      %s47 = sphi 0, %s46
      %s63 = sphi 0, %s47
      %s69 = sphi 0, %s71
      %s72 = sphi 0, %s69
      %s73 = sphi 0, %s72
      %s89 = sphi 0, %s73
      %s95 = sphi 0, %s97
      %s98 = sphi 0, %s95
      %s99 = sphi 0, %s98
      %s115 = sphi 0, %s99
      %s121 = sphi 0, %s123
      %s124 = sphi 0, %s121
      %s125 = sphi 0, %s124
      %s141 = sphi 0, %s125
      %s147 = sphi 0, %s149
      %s150 = sphi 0, %s147
      %s151 = sphi 0, %s150
      %s167 = sphi 0, %s151
      %s173 = sphi 0, %s175
      %s176 = sphi 0, %s173
      %s177 = sphi 0, %s176
      %s193 = sphi 0, %s177
      %s199 = sphi 0, %s201
      %s202 = sphi 0, %s199
      %s203 = sphi 0, %s202
      %s219 = sphi 0, %s203
      %s225 = sphi 0, %s227
      %s228 = sphi 0, %s225
      %s229 = sphi 0, %s228
      %s245 = sphi 0, %s229
      %s251 = sphi 0, %s253
      %s254 = sphi 0, %s251
      %s255 = sphi 0, %s254
      %s271 = sphi 0, %s255
      %s277 = sphi 0, %s279
      %s280 = sphi 0, %s277
      %s281 = sphi 0, %s280
      %s297 = sphi 0, %s281
      %s303 = sphi 0, %s305
      %s306 = sphi 0, %s303
      %s307 = sphi 0, %s306
      %s323 = sphi 0, %s307
      %s329 = sphi 0, %s331
      %s332 = sphi 0, %s329
      %s333 = sphi 0, %s332
      %s349 = sphi 0, %s333
      %s355 = sphi 0, %s357
      %s358 = sphi 0, %s355
      %s359 = sphi 0, %s358
      %s375 = sphi 0, %s359
      %s381 = sphi 0, %s383
      %s384 = sphi 0, %s381
      %s385 = sphi 0, %s384
      %s401 = sphi 0, %s385
    $region4: #{transformer_forward.1} parent=1 // loop_header_branch
      %24 = sbr.rel (%p22) target = $region8
    $region5: #{transformer_forward.1} parent=1 // loop_body
      %s26 = ssub.s32 %s21, 1
      %s27 = ssub.s32 %s21, 2
      %s34 = sadd.s32 1, %s29
      %p35 = scmp.ge.s32.totalorder %s34, 2
      %s36 = scalar_select %p35, 0, %s34
      %s37 = sadd.s32 1, %s28
      %s38 = scalar_select %p35, %s37, %s28
      %p39 = scmp.ge.s32.totalorder %s38, 1
      %s40 = scalar_select %p39, 0, %s38
      %s41 = ssub.s32 %s28, %s40
      %p42 = scmp.eq.s32.totalorder %s41, 0
      %s44 = sadd.s32 %s43, 1
      %s45 = scalar_select %p42, %s43, %s44
      %p48 = pneg %p42
      %p49 = scmp.eq.s32.totalorder %s21, 1
      %p50 = por %p48, %p49
      %p51 = scmp.ne.s32.totalorder %s43, %s46
      %p52 = scmp.eq.s32.totalorder %s21, 0
      %p53 = por %p51, %p52
      %p54 = scmp.ne.s32.totalorder %s43, %s46
      %p55 = scmp.eq.s32.totalorder %s26, 1
      %p56 = por %p54, %p55
      %p57 = scmp.ne.s32.totalorder %s46, %s47
      %p58 = scmp.eq.s32.totalorder %s26, 0
      %p59 = por %p57, %p58
      %p60 = scmp.ne.s32.totalorder %s46, %s47
      %p61 = scmp.eq.s32.totalorder %s27, 1
      %p62 = por %p60, %p61
      %p64 = scmp.ne.s32.totalorder %s47, %s63
      %p65 = scmp.eq.s32.totalorder %s27, 0
      %p66 = por %p64, %p65
      %s67 = ssub.s32 %s29, %s36
      %p68 = scmp.eq.s32.totalorder %s67, 0
      %s70 = sadd.s32 %s69, 1
      %s71 = scalar_select %p68, %s69, %s70
      %p74 = pneg %p68
      %p75 = scmp.eq.s32.totalorder %s21, 1
      %p76 = por %p74, %p75
      %p77 = scmp.ne.s32.totalorder %s69, %s72
      %p78 = scmp.eq.s32.totalorder %s21, 0
      %p79 = por %p77, %p78
      %p80 = scmp.ne.s32.totalorder %s69, %s72
      %p81 = scmp.eq.s32.totalorder %s26, 1
      %p82 = por %p80, %p81
      %p83 = scmp.ne.s32.totalorder %s72, %s73
      %p84 = scmp.eq.s32.totalorder %s26, 0
      %p85 = por %p83, %p84
      %p86 = scmp.ne.s32.totalorder %s72, %s73
      %p87 = scmp.eq.s32.totalorder %s27, 1
      %p88 = por %p86, %p87
      %p90 = scmp.ne.s32.totalorder %s73, %s89
      %p91 = scmp.eq.s32.totalorder %s27, 0
      %p92 = por %p90, %p91
      %s93 = ssub.s32 %s29, %s36
      %p94 = scmp.eq.s32.totalorder %s93, 0
      %s96 = sadd.s32 %s95, 1
      %s97 = scalar_select %p94, %s95, %s96
      %p100 = pneg %p94
      %p101 = scmp.eq.s32.totalorder %s21, 1
      %p102 = por %p100, %p101
      %p103 = scmp.ne.s32.totalorder %s95, %s98
      %p104 = scmp.eq.s32.totalorder %s21, 0
      %p105 = por %p103, %p104
      %p106 = scmp.ne.s32.totalorder %s95, %s98
      %p107 = scmp.eq.s32.totalorder %s26, 1
      %p108 = por %p106, %p107
      %p109 = scmp.ne.s32.totalorder %s98, %s99
      %p110 = scmp.eq.s32.totalorder %s26, 0
      %p111 = por %p109, %p110
      %p112 = scmp.ne.s32.totalorder %s98, %s99
      %p113 = scmp.eq.s32.totalorder %s27, 1
      %p114 = por %p112, %p113
      %p116 = scmp.ne.s32.totalorder %s99, %s115
      %p117 = scmp.eq.s32.totalorder %s27, 0
      %p118 = por %p116, %p117
      %s119 = ssub.s32 %s29, %s36
      %p120 = scmp.eq.s32.totalorder %s119, 0
      %s122 = sadd.s32 %s121, 1
      %s123 = scalar_select %p120, %s121, %s122
      %p126 = pneg %p120
      %p127 = scmp.eq.s32.totalorder %s21, 1
      %p128 = por %p126, %p127
      %p129 = scmp.ne.s32.totalorder %s121, %s124
      %p130 = scmp.eq.s32.totalorder %s21, 0
      %p131 = por %p129, %p130
      %p132 = scmp.ne.s32.totalorder %s121, %s124
      %p133 = scmp.eq.s32.totalorder %s26, 1
      %p134 = por %p132, %p133
      %p135 = scmp.ne.s32.totalorder %s124, %s125
      %p136 = scmp.eq.s32.totalorder %s26, 0
      %p137 = por %p135, %p136
      %p138 = scmp.ne.s32.totalorder %s124, %s125
      %p139 = scmp.eq.s32.totalorder %s27, 1
      %p140 = por %p138, %p139
      %p142 = scmp.ne.s32.totalorder %s125, %s141
      %p143 = scmp.eq.s32.totalorder %s27, 0
      %p144 = por %p142, %p143
      %s145 = ssub.s32 %s29, %s36
      %p146 = scmp.eq.s32.totalorder %s145, 0
      %s148 = sadd.s32 %s147, 1
      %s149 = scalar_select %p146, %s147, %s148
      %p152 = pneg %p146
      %p153 = scmp.eq.s32.totalorder %s21, 1
      %p154 = por %p152, %p153
      %p155 = scmp.ne.s32.totalorder %s147, %s150
      %p156 = scmp.eq.s32.totalorder %s21, 0
      %p157 = por %p155, %p156
      %p158 = scmp.ne.s32.totalorder %s147, %s150
      %p159 = scmp.eq.s32.totalorder %s26, 1
      %p160 = por %p158, %p159
      %p161 = scmp.ne.s32.totalorder %s150, %s151
      %p162 = scmp.eq.s32.totalorder %s26, 0
      %p163 = por %p161, %p162
      %p164 = scmp.ne.s32.totalorder %s150, %s151
      %p165 = scmp.eq.s32.totalorder %s27, 1
      %p166 = por %p164, %p165
      %p168 = scmp.ne.s32.totalorder %s151, %s167
      %p169 = scmp.eq.s32.totalorder %s27, 0
      %p170 = por %p168, %p169
      %s171 = ssub.s32 %s29, %s36
      %p172 = scmp.eq.s32.totalorder %s171, 0
      %s174 = sadd.s32 %s173, 1
      %s175 = scalar_select %p172, %s173, %s174
      %p178 = pneg %p172
      %p179 = scmp.eq.s32.totalorder %s21, 1
      %p180 = por %p178, %p179
      %p181 = scmp.ne.s32.totalorder %s173, %s176
      %p182 = scmp.eq.s32.totalorder %s21, 0
      %p183 = por %p181, %p182
      %p184 = scmp.ne.s32.totalorder %s173, %s176
      %p185 = scmp.eq.s32.totalorder %s26, 1
      %p186 = por %p184, %p185
      %p187 = scmp.ne.s32.totalorder %s176, %s177
      %p188 = scmp.eq.s32.totalorder %s26, 0
      %p189 = por %p187, %p188
      %p190 = scmp.ne.s32.totalorder %s176, %s177
      %p191 = scmp.eq.s32.totalorder %s27, 1
      %p192 = por %p190, %p191
      %p194 = scmp.ne.s32.totalorder %s177, %s193
      %p195 = scmp.eq.s32.totalorder %s27, 0
      %p196 = por %p194, %p195
      %s197 = ssub.s32 %s29, %s36
      %p198 = scmp.eq.s32.totalorder %s197, 0
      %s200 = sadd.s32 %s199, 1
      %s201 = scalar_select %p198, %s199, %s200
      %p204 = pneg %p198
      %p205 = scmp.eq.s32.totalorder %s21, 1
      %p206 = por %p204, %p205
      %p207 = scmp.ne.s32.totalorder %s199, %s202
      %p208 = scmp.eq.s32.totalorder %s21, 0
      %p209 = por %p207, %p208
      %p210 = scmp.ne.s32.totalorder %s199, %s202
      %p211 = scmp.eq.s32.totalorder %s26, 1
      %p212 = por %p210, %p211
      %p213 = scmp.ne.s32.totalorder %s202, %s203
      %p214 = scmp.eq.s32.totalorder %s26, 0
      %p215 = por %p213, %p214
      %p216 = scmp.ne.s32.totalorder %s202, %s203
      %p217 = scmp.eq.s32.totalorder %s27, 1
      %p218 = por %p216, %p217
      %p220 = scmp.ne.s32.totalorder %s203, %s219
      %p221 = scmp.eq.s32.totalorder %s27, 0
      %p222 = por %p220, %p221
      %s223 = ssub.s32 %s29, %s36
      %p224 = scmp.eq.s32.totalorder %s223, 0
      %s226 = sadd.s32 %s225, 1
      %s227 = scalar_select %p224, %s225, %s226
      %p230 = pneg %p224
      %p231 = scmp.eq.s32.totalorder %s21, 1
      %p232 = por %p230, %p231
      %p233 = scmp.ne.s32.totalorder %s225, %s228
      %p234 = scmp.eq.s32.totalorder %s21, 0
      %p235 = por %p233, %p234
      %p236 = scmp.ne.s32.totalorder %s225, %s228
      %p237 = scmp.eq.s32.totalorder %s26, 1
      %p238 = por %p236, %p237
      %p239 = scmp.ne.s32.totalorder %s228, %s229
      %p240 = scmp.eq.s32.totalorder %s26, 0
      %p241 = por %p239, %p240
      %p242 = scmp.ne.s32.totalorder %s228, %s229
      %p243 = scmp.eq.s32.totalorder %s27, 1
      %p244 = por %p242, %p243
      %p246 = scmp.ne.s32.totalorder %s229, %s245
      %p247 = scmp.eq.s32.totalorder %s27, 0
      %p248 = por %p246, %p247
      %s249 = ssub.s32 %s29, %s36
      %p250 = scmp.eq.s32.totalorder %s249, 0
      %s252 = sadd.s32 %s251, 1
      %s253 = scalar_select %p250, %s251, %s252
      %p256 = pneg %p250
      %p257 = scmp.eq.s32.totalorder %s21, 1
      %p258 = por %p256, %p257
      %p259 = scmp.ne.s32.totalorder %s251, %s254
      %p260 = scmp.eq.s32.totalorder %s21, 0
      %p261 = por %p259, %p260
      %p262 = scmp.ne.s32.totalorder %s251, %s254
      %p263 = scmp.eq.s32.totalorder %s26, 1
      %p264 = por %p262, %p263
      %p265 = scmp.ne.s32.totalorder %s254, %s255
      %p266 = scmp.eq.s32.totalorder %s26, 0
      %p267 = por %p265, %p266
      %p268 = scmp.ne.s32.totalorder %s254, %s255
      %p269 = scmp.eq.s32.totalorder %s27, 1
      %p270 = por %p268, %p269
      %p272 = scmp.ne.s32.totalorder %s255, %s271
      %p273 = scmp.eq.s32.totalorder %s27, 0
      %p274 = por %p272, %p273
      %s275 = ssub.s32 %s29, %s36
      %p276 = scmp.eq.s32.totalorder %s275, 0
      %s278 = sadd.s32 %s277, 1
      %s279 = scalar_select %p276, %s277, %s278
      %p282 = pneg %p276
      %p283 = scmp.eq.s32.totalorder %s21, 1
      %p284 = por %p282, %p283
      %p285 = scmp.ne.s32.totalorder %s277, %s280
      %p286 = scmp.eq.s32.totalorder %s21, 0
      %p287 = por %p285, %p286
      %p288 = scmp.ne.s32.totalorder %s277, %s280
      %p289 = scmp.eq.s32.totalorder %s26, 1
      %p290 = por %p288, %p289
      %p291 = scmp.ne.s32.totalorder %s280, %s281
      %p292 = scmp.eq.s32.totalorder %s26, 0
      %p293 = por %p291, %p292
      %p294 = scmp.ne.s32.totalorder %s280, %s281
      %p295 = scmp.eq.s32.totalorder %s27, 1
      %p296 = por %p294, %p295
      %p298 = scmp.ne.s32.totalorder %s281, %s297
      %p299 = scmp.eq.s32.totalorder %s27, 0
      %p300 = por %p298, %p299
      %s301 = ssub.s32 %s29, %s36
      %p302 = scmp.eq.s32.totalorder %s301, 0
      %s304 = sadd.s32 %s303, 1
      %s305 = scalar_select %p302, %s303, %s304
      %p308 = pneg %p302
      %p309 = scmp.eq.s32.totalorder %s21, 1
      %p310 = por %p308, %p309
      %p311 = scmp.ne.s32.totalorder %s303, %s306
      %p312 = scmp.eq.s32.totalorder %s21, 0
      %p313 = por %p311, %p312
      %p314 = scmp.ne.s32.totalorder %s303, %s306
      %p315 = scmp.eq.s32.totalorder %s26, 1
      %p316 = por %p314, %p315
      %p317 = scmp.ne.s32.totalorder %s306, %s307
      %p318 = scmp.eq.s32.totalorder %s26, 0
      %p319 = por %p317, %p318
      %p320 = scmp.ne.s32.totalorder %s306, %s307
      %p321 = scmp.eq.s32.totalorder %s27, 1
      %p322 = por %p320, %p321
      %p324 = scmp.ne.s32.totalorder %s307, %s323
      %p325 = scmp.eq.s32.totalorder %s27, 0
      %p326 = por %p324, %p325
      %s327 = ssub.s32 %s29, %s36
      %p328 = scmp.eq.s32.totalorder %s327, 0
      %s330 = sadd.s32 %s329, 1
      %s331 = scalar_select %p328, %s329, %s330
      %p334 = pneg %p328
      %p335 = scmp.eq.s32.totalorder %s21, 1
      %p336 = por %p334, %p335
      %p337 = scmp.ne.s32.totalorder %s329, %s332
      %p338 = scmp.eq.s32.totalorder %s21, 0
      %p339 = por %p337, %p338
      %p340 = scmp.ne.s32.totalorder %s329, %s332
      %p341 = scmp.eq.s32.totalorder %s26, 1
      %p342 = por %p340, %p341
      %p343 = scmp.ne.s32.totalorder %s332, %s333
      %p344 = scmp.eq.s32.totalorder %s26, 0
      %p345 = por %p343, %p344
      %p346 = scmp.ne.s32.totalorder %s332, %s333
      %p347 = scmp.eq.s32.totalorder %s27, 1
      %p348 = por %p346, %p347
      %p350 = scmp.ne.s32.totalorder %s333, %s349
      %p351 = scmp.eq.s32.totalorder %s27, 0
      %p352 = por %p350, %p351
      %s353 = ssub.s32 %s29, %s36
      %p354 = scmp.eq.s32.totalorder %s353, 0
      %s356 = sadd.s32 %s355, 1
      %s357 = scalar_select %p354, %s355, %s356
      %p360 = pneg %p354
      %p361 = scmp.eq.s32.totalorder %s21, 1
      %p362 = por %p360, %p361
      %p363 = scmp.ne.s32.totalorder %s355, %s358
      %p364 = scmp.eq.s32.totalorder %s21, 0
      %p365 = por %p363, %p364
      %p366 = scmp.ne.s32.totalorder %s355, %s358
      %p367 = scmp.eq.s32.totalorder %s26, 1
      %p368 = por %p366, %p367
      %p369 = scmp.ne.s32.totalorder %s358, %s359
      %p370 = scmp.eq.s32.totalorder %s26, 0
      %p371 = por %p369, %p370
      %p372 = scmp.ne.s32.totalorder %s358, %s359
      %p373 = scmp.eq.s32.totalorder %s27, 1
      %p374 = por %p372, %p373
      %p376 = scmp.ne.s32.totalorder %s359, %s375
      %p377 = scmp.eq.s32.totalorder %s27, 0
      %p378 = por %p376, %p377
      %s379 = ssub.s32 %s28, %s40
      %p380 = scmp.eq.s32.totalorder %s379, 0
      %s382 = sadd.s32 %s381, 1
      %s383 = scalar_select %p380, %s381, %s382
      %p386 = pneg %p380
      %p387 = scmp.eq.s32.totalorder %s21, 1
      %p388 = por %p386, %p387
      %p389 = scmp.ne.s32.totalorder %s381, %s384
      %p390 = scmp.eq.s32.totalorder %s21, 0
      %p391 = por %p389, %p390
      %p392 = scmp.ne.s32.totalorder %s381, %s384
      %p393 = scmp.eq.s32.totalorder %s26, 1
      %p394 = por %p392, %p393
      %p395 = scmp.ne.s32.totalorder %s384, %s385
      %p396 = scmp.eq.s32.totalorder %s26, 0
      %p397 = por %p395, %p396
      %p398 = scmp.ne.s32.totalorder %s384, %s385
      %p399 = scmp.eq.s32.totalorder %s27, 1
      %p400 = por %p398, %p399
      %p402 = scmp.ne.s32.totalorder %s385, %s401
      %p403 = scmp.eq.s32.totalorder %s27, 0
      %p404 = por %p402, %p403
      %p405 = scmp.le.s32.totalorder 1, %s21
      %p406 = scmp.lt.s32.totalorder %s21, 3
      %p407 = pnand %p405, %p406
      %p408 = pneg %p407
      // Predicated region
      $region9: #{transformer_forward.1} parent=5 // pred_check
        _
      $region10: #{transformer_forward.1} parent=5 // pred_check_branch
        %410 = sbr.rel (%p407) target = $region12
      $region11: #{transformer_forward.1} parent=5 // pred_region
        %s411 = ssub.s32 %s21, 1
        // Predicated region
        $region13: #{transformer_forward.1} parent=11 // pred_check
          %p412 = pneg %p59
        $region14: #{transformer_forward.1} parent=11 // pred_check_branch
          %414 = sbr.rel (%p412) target = $region16
        $region15: #{transformer_forward.1} parent=11 // pred_region
          %s415 = smul.u32 2, %s30
          %s417 = ssub.s32 256, 256
          %418 = vsyncadd [#allocation4], %s417
          %s419 = smul.addr %s415, 128
          %s420 = scalar_lea.hbm %s0, %s419
          %s421 = sshll.u32 [#allocation3], 4
          %s422 = int_to_ptr.vmem [resolvable:$true] %s421
          %427 = dma.hbm_to_vmem [thread:$0]  %s420, 256, %s422, [#allocation4], 128, 128, 8
        $region16: #{transformer_forward.1} parent=11 // pred_fallthru
          _
      $region12: #{transformer_forward.1} parent=5 // pred_fallthru
        _
      %p428 = scmp.lt.s32.totalorder %s21, 2
      // Predicated region
      $region17: #{transformer_forward.1} parent=5 // pred_check
        %p429 = pneg %p428
      $region18: #{transformer_forward.1} parent=5 // pred_check_branch
        %431 = sbr.rel (%p429) target = $region20
      $region19: #{transformer_forward.1} parent=5 // pred_region
        // Predicated region
        $region21: #{transformer_forward.1} parent=19 // pred_check
          %p432 = pneg %p79
        $region22: #{transformer_forward.1} parent=19 // pred_check_branch
          %434 = sbr.rel (%p432) target = $region24
        $region23: #{transformer_forward.1} parent=19 // pred_region
          %p435 = scmp.lt.s32.totalorder %s29, 1
          %s436 = scalar_select %p435, %s29, 1
          %s437 = smul.addr %s436, 4
          %s438 = smul.addr %s437, 4
          %s439 = scalar_lea.vmem %s1, %s438
        $region24: #{transformer_forward.1} parent=19 // pred_fallthru
          _
        // Predicated region
        $region25: #{transformer_forward.1} parent=19 // pred_check
          %p440 = pneg %p105
        $region26: #{transformer_forward.1} parent=19 // pred_check_branch
          %442 = sbr.rel (%p440) target = $region28
        $region27: #{transformer_forward.1} parent=19 // pred_region
          %p443 = scmp.lt.s32.totalorder %s29, 1
          %s444 = scalar_select %p443, %s29, 1
          %s445 = scalar_lea.vmem %s2, %s444
        $region28: #{transformer_forward.1} parent=19 // pred_fallthru
          _
        // Predicated region
        $region29: #{transformer_forward.1} parent=19 // pred_check
          %p446 = pneg %p131
        $region30: #{transformer_forward.1} parent=19 // pred_check_branch
          %448 = sbr.rel (%p446) target = $region32
        $region31: #{transformer_forward.1} parent=19 // pred_region
          %p449 = scmp.lt.s32.totalorder %s29, 1
          %s450 = scalar_select %p449, %s29, 1
          %s451 = smul.addr %s450, 4
          %s452 = smul.addr %s451, 4
          %s453 = scalar_lea.vmem %s3, %s452
        $region32: #{transformer_forward.1} parent=19 // pred_fallthru
          _
        // Predicated region
        $region33: #{transformer_forward.1} parent=19 // pred_check
          %p454 = pneg %p157
        $region34: #{transformer_forward.1} parent=19 // pred_check_branch
          %456 = sbr.rel (%p454) target = $region36
        $region35: #{transformer_forward.1} parent=19 // pred_region
          %p457 = scmp.lt.s32.totalorder %s29, 1
          %s458 = scalar_select %p457, %s29, 1
          %s459 = scalar_lea.vmem %s4, %s458
        $region36: #{transformer_forward.1} parent=19 // pred_fallthru
          _
        // Predicated region
        $region37: #{transformer_forward.1} parent=19 // pred_check
          %p460 = pneg %p183
        $region38: #{transformer_forward.1} parent=19 // pred_check_branch
          %462 = sbr.rel (%p460) target = $region40
        $region39: #{transformer_forward.1} parent=19 // pred_region
          %p463 = scmp.lt.s32.totalorder %s29, 1
          %s464 = scalar_select %p463, %s29, 1
          %s465 = scalar_lea.vmem %s5, %s464
        $region40: #{transformer_forward.1} parent=19 // pred_fallthru
          _
        // Predicated region
        $region41: #{transformer_forward.1} parent=19 // pred_check
          %p466 = pneg %p209
        $region42: #{transformer_forward.1} parent=19 // pred_check_branch
          %468 = sbr.rel (%p466) target = $region44
        $region43: #{transformer_forward.1} parent=19 // pred_region
          %p469 = scmp.lt.s32.totalorder %s29, 1
          %s470 = scalar_select %p469, %s29, 1
          %s471 = scalar_lea.vmem %s6, %s470
        $region44: #{transformer_forward.1} parent=19 // pred_fallthru
          _
        // Predicated region
        $region45: #{transformer_forward.1} parent=19 // pred_check
          %p472 = pneg %p235
        $region46: #{transformer_forward.1} parent=19 // pred_check_branch
          %474 = sbr.rel (%p472) target = $region48
        $region47: #{transformer_forward.1} parent=19 // pred_region
          %p475 = scmp.lt.s32.totalorder %s29, 1
          %s476 = scalar_select %p475, %s29, 1
          %s477 = smul.addr %s476, 4
          %s478 = smul.addr %s477, 4
          %s479 = scalar_lea.vmem %s7, %s478
        $region48: #{transformer_forward.1} parent=19 // pred_fallthru
          _
        // Predicated region
        $region49: #{transformer_forward.1} parent=19 // pred_check
          %p480 = pneg %p261
        $region50: #{transformer_forward.1} parent=19 // pred_check_branch
          %482 = sbr.rel (%p480) target = $region52
        $region51: #{transformer_forward.1} parent=19 // pred_region
          %p483 = scmp.lt.s32.totalorder %s29, 1
          %s484 = scalar_select %p483, %s29, 1
          %s485 = scalar_lea.vmem %s8, %s484
        $region52: #{transformer_forward.1} parent=19 // pred_fallthru
          _
        // Predicated region
        $region53: #{transformer_forward.1} parent=19 // pred_check
          %p486 = pneg %p287
        $region54: #{transformer_forward.1} parent=19 // pred_check_branch
          %488 = sbr.rel (%p486) target = $region56
        $region55: #{transformer_forward.1} parent=19 // pred_region
          %p489 = scmp.lt.s32.totalorder %s29, 1
          %s490 = scalar_select %p489, %s29, 1
          %s491 = smul.addr %s490, 8
          %s492 = smul.addr %s491, 4
          %s493 = scalar_lea.vmem %s9, %s492
        $region56: #{transformer_forward.1} parent=19 // pred_fallthru
          _
        // Predicated region
        $region57: #{transformer_forward.1} parent=19 // pred_check
          %p494 = pneg %p313
        $region58: #{transformer_forward.1} parent=19 // pred_check_branch
          %496 = sbr.rel (%p494) target = $region60
        $region59: #{transformer_forward.1} parent=19 // pred_region
          %p497 = scmp.lt.s32.totalorder %s29, 1
          %s498 = scalar_select %p497, %s29, 1
          %s499 = scalar_lea.vmem %s10, %s498
        $region60: #{transformer_forward.1} parent=19 // pred_fallthru
          _
        // Predicated region
        $region61: #{transformer_forward.1} parent=19 // pred_check
          %p500 = pneg %p339
        $region62: #{transformer_forward.1} parent=19 // pred_check_branch
          %502 = sbr.rel (%p500) target = $region64
        $region63: #{transformer_forward.1} parent=19 // pred_region
          %p503 = scmp.lt.s32.totalorder %s29, 1
          %s504 = scalar_select %p503, %s29, 1
          %s505 = scalar_lea.vmem %s11, %s504
        $region64: #{transformer_forward.1} parent=19 // pred_fallthru
          _
        // Predicated region
        $region65: #{transformer_forward.1} parent=19 // pred_check
          %p506 = pneg %p365
        $region66: #{transformer_forward.1} parent=19 // pred_check_branch
          %508 = sbr.rel (%p506) target = $region68
        $region67: #{transformer_forward.1} parent=19 // pred_region
          %p509 = scmp.lt.s32.totalorder %s29, 1
          %s510 = scalar_select %p509, %s29, 1
          %s511 = scalar_lea.vmem %s12, %s510
        $region68: #{transformer_forward.1} parent=19 // pred_fallthru
          _
      $region20: #{transformer_forward.1} parent=5 // pred_fallthru
        _
      %p512 = scmp.le.s32.totalorder 1, %s21
      %p513 = scmp.lt.s32.totalorder %s21, 3
      %p514 = pnand %p512, %p513
      %p515 = pneg %p514
      // Predicated region
      $region69: #{transformer_forward.1} parent=5 // pred_check
        _
      $region70: #{transformer_forward.1} parent=5 // pred_check_branch
        %517 = sbr.rel (%p514) target = $region72
      $region71: #{transformer_forward.1} parent=5 // pred_region
        %s518 = ssub.s32 %s21, 1
        // Predicated region
        $region73: #{transformer_forward.1} parent=71 // pred_check
          %p519 = pneg %p59
        $region74: #{transformer_forward.1} parent=71 // pred_check_branch
          %521 = sbr.rel (%p519) target = $region76
        $region75: #{transformer_forward.1} parent=71 // pred_region
          %522 = dma.done [#allocation4], 256
        $region76: #{transformer_forward.1} parent=71 // pred_fallthru
          _
        %p523 = pneg %p59
        %p524 = pneg %p56
        %p525 = scmp.lt.s32.totalorder %s31, 1
        %s526 = scalar_select %p525, %s31, 1
        %s527 = smul.addr %s526, 4
        %s528 = smul.addr %s527, 4
        %s529 = scalar_lea.vmem %s1, %s528
        %p530 = pneg %p85
        %p531 = pneg %p82
        %p532 = scmp.lt.s32.totalorder %s31, 1
        %s533 = scalar_select %p532, %s31, 1
        %s534 = scalar_lea.vmem %s2, %s533
        %p535 = pneg %p111
        %p536 = pneg %p108
        %p537 = scmp.lt.s32.totalorder %s31, 1
        %s538 = scalar_select %p537, %s31, 1
        %s539 = smul.addr %s538, 4
        %s540 = smul.addr %s539, 4
        %s541 = scalar_lea.vmem %s3, %s540
        %p542 = pneg %p137
        %p543 = pneg %p134
        %p544 = scmp.lt.s32.totalorder %s31, 1
        %s545 = scalar_select %p544, %s31, 1
        %s546 = scalar_lea.vmem %s4, %s545
        %p547 = pneg %p163
        %p548 = pneg %p160
        %p549 = scmp.lt.s32.totalorder %s31, 1
        %s550 = scalar_select %p549, %s31, 1
        %s551 = scalar_lea.vmem %s5, %s550
        %p552 = pneg %p189
        %p553 = pneg %p186
        %p554 = scmp.lt.s32.totalorder %s31, 1
        %s555 = scalar_select %p554, %s31, 1
        %s556 = scalar_lea.vmem %s6, %s555
        %p557 = pneg %p215
        %p558 = pneg %p212
        %p559 = scmp.lt.s32.totalorder %s31, 1
        %s560 = scalar_select %p559, %s31, 1
        %s561 = smul.addr %s560, 4
        %s562 = smul.addr %s561, 4
        %s563 = scalar_lea.vmem %s7, %s562
        %p564 = pneg %p241
        %p565 = pneg %p238
        %p566 = scmp.lt.s32.totalorder %s31, 1
        %s567 = scalar_select %p566, %s31, 1
        %s568 = scalar_lea.vmem %s8, %s567
        %p569 = pneg %p267
        %p570 = pneg %p264
        %p571 = scmp.lt.s32.totalorder %s31, 1
        %s572 = scalar_select %p571, %s31, 1
        %s573 = smul.addr %s572, 8
        %s574 = smul.addr %s573, 4
        %s575 = scalar_lea.vmem %s9, %s574
        %p576 = pneg %p293
        %p577 = pneg %p290
        %p578 = scmp.lt.s32.totalorder %s31, 1
        %s579 = scalar_select %p578, %s31, 1
        %s580 = scalar_lea.vmem %s10, %s579
        %p581 = pneg %p319
        %p582 = pneg %p316
        %p583 = scmp.lt.s32.totalorder %s31, 1
        %s584 = scalar_select %p583, %s31, 1
        %s585 = scalar_lea.vmem %s11, %s584
        %p586 = pneg %p345
        %p587 = pneg %p342
        %p588 = scmp.lt.s32.totalorder %s31, 1
        %s589 = scalar_select %p588, %s31, 1
        %s590 = scalar_lea.vmem %s12, %s589
        %p591 = pneg %p371
        %p592 = pneg %p368
        %p593 = pneg %p397
        %p594 = pneg %p394
        %s595 = smul.u32 2, %s30
        %p596 = scmp.lt.s32.totalorder %s31, 1
        %s597 = scalar_select %p596, %s31, 1
        %s598 = smul.addr %s597, 4
        %s599 = smul.addr %s598, 4
        %s600 = scalar_lea.vmem %s1, %s599
        %p601 = scmp.lt.s32.totalorder %s31, 1
        %s602 = scalar_select %p601, %s31, 1
        %s603 = scalar_lea.vmem %s2, %s602
        %p604 = scmp.lt.s32.totalorder %s31, 1
        %s605 = scalar_select %p604, %s31, 1
        %s606 = smul.addr %s605, 4
        %s607 = smul.addr %s606, 4
        %s608 = scalar_lea.vmem %s3, %s607
        %p609 = scmp.lt.s32.totalorder %s31, 1
        %s610 = scalar_select %p609, %s31, 1
        %s611 = scalar_lea.vmem %s4, %s610
        %p612 = scmp.lt.s32.totalorder %s31, 1
        %s613 = scalar_select %p612, %s31, 1
        %s614 = scalar_lea.vmem %s5, %s613
        %p615 = scmp.lt.s32.totalorder %s31, 1
        %s616 = scalar_select %p615, %s31, 1
        %s617 = scalar_lea.vmem %s6, %s616
        %p618 = scmp.lt.s32.totalorder %s31, 1
        %s619 = scalar_select %p618, %s31, 1
        %s620 = smul.addr %s619, 4
        %s621 = smul.addr %s620, 4
        %s622 = scalar_lea.vmem %s7, %s621
        %p623 = scmp.lt.s32.totalorder %s31, 1
        %s624 = scalar_select %p623, %s31, 1
        %s625 = scalar_lea.vmem %s8, %s624
        %p626 = scmp.lt.s32.totalorder %s31, 1
        %s627 = scalar_select %p626, %s31, 1
        %s628 = smul.addr %s627, 8
        %s629 = smul.addr %s628, 4
        %s630 = scalar_lea.vmem %s9, %s629
        %p631 = scmp.lt.s32.totalorder %s31, 1
        %s632 = scalar_select %p631, %s31, 1
        %s633 = scalar_lea.vmem %s10, %s632
        %p634 = scmp.lt.s32.totalorder %s31, 1
        %s635 = scalar_select %p634, %s31, 1
        %s636 = scalar_lea.vmem %s11, %s635
        %p637 = scmp.lt.s32.totalorder %s31, 1
        %s638 = scalar_select %p637, %s31, 1
        %s639 = scalar_lea.vmem %s12, %s638
        %s640 = smul.u32 2, %s30
        %p642 = scmp.eq.s32.totalorder %s31, 0
        // Predicated region
        $region77: #{transformer_forward.1} parent=71 // pred_check
          %p643 = pneg %p642
        $region78: #{transformer_forward.1} parent=71 // pred_check_branch
          %645 = sbr.rel (%p643) target = $region80
        $region79: #{transformer_forward.1} parent=71 // pred_region
          %v646 = vld [vmem:[#allocation3] sm:$0xff]
          %v647 = vld [vmem:[#allocation3 + $0x8] sm:$0xff]
          %vm648 = vcmask 261120
          %649 = vst.msk [vmem:[#allocation2] sm:$0xff] %vm648, %v646
          %650 = vst.msk [vmem:[#allocation2 + $0x8] sm:$0xff] %vm648, %v647
        $region80: #{transformer_forward.1} parent=71 // pred_fallthru
          _
        %v651 = vld [vmem:[#allocation2] sm:$0xff]
        %v652 = vld [vmem:[#allocation2 + $0x8] sm:$0xff]
        %v653 = vld [vmem:[%s600] sm:$0xf]
        %v654 = vld [vmem:[%s600 + $0x4] sm:$0xf]
        %v655 = vld [vmem:[%s600 + $0x8] sm:$0xf]
        %v656 = vld [vmem:[%s600 + $0xc] sm:$0xf]
        %v657 = vld [vmem:[%s603] sm:$0x1]
        %v658 = vld [vmem:[%s608] sm:$0xf]
        %v659 = vld [vmem:[%s608 + $0x4] sm:$0xf]
        %v660 = vld [vmem:[%s608 + $0x8] sm:$0xf]
        %v661 = vld [vmem:[%s608 + $0xc] sm:$0xf]
        %v662 = vld [vmem:[%s611] sm:$0x1]
        %v663 = vld [vmem:[%s622] sm:$0xf]
        %v664 = vld [vmem:[%s622 + $0x4] sm:$0xf]
        %v665 = vld [vmem:[%s622 + $0x8] sm:$0xf]
        %v666 = vld [vmem:[%s622 + $0xc] sm:$0xf]
        %v667 = vld [vmem:[%s625] sm:$0x1]
        %v668 = vld [vmem:[%s630] sm:$0xf]
        %v669 = vld [vmem:[%s630 + $0x4] sm:$0xf]
        %v670 = vld [vmem:[%s630 + $0x8] sm:$0xf]
        %v671 = vld [vmem:[%s630 + $0xc] sm:$0xf]
        %v672 = vld [vmem:[%s630 + $0x10] sm:$0xf]
        %v673 = vld [vmem:[%s630 + $0x14] sm:$0xf]
        %v674 = vld [vmem:[%s630 + $0x18] sm:$0xf]
        %v675 = vld [vmem:[%s630 + $0x1c] sm:$0xf]
        %v676 = vld [vmem:[%s633] sm:$0x1]
        %v677 = vpack.c.bf16 %v652, %v651
        %v679 = vlaneseq
        %v680 = vshrl.u32 %v679, 7
        %v681 = vsub.s32 0, %v680
        %v682 = vrot.slane %v657, %v681
        %v688 = vunpack.c.l.b16 %v653
        %v689 = vunpack.c.l.b16 %v654
        %v690 = vunpack.c.l.b16 %v655
        %v691 = vunpack.c.l.b16 %v656
        %v692 = vpack.c.b16 %v689, %v688
        %v693 = vpack.c.b16 %v691, %v690
        %vm696 = vcmask 261120
        %v698 = vsel %vm696, %v677, 0
        %700 = vmatprep.subr.bf16.mxu0 0
        %701 = vmatpush1.bf16.msra.mxu0 0
        %702 = vmatprep.subr.bf16.mxu0 0
        %703 = vmatpush1.bf16.msra.mxu0 0
        %704 = vmatprep.subr.bf16.mxu0 0
        %705 = vmatpush1.bf16.msra.mxu0 0
        %706 = vmatprep.subr.bf16.mxu0 0
        %707 = vmatpush1.bf16.msra.mxu0 0
        %708 = vmatprep.subr.bf16.mxu0 0
        %709 = vmatpush1.bf16.msra.mxu0 0
        %710 = vmatprep.subr.bf16.mxu0 0
        %711 = vmatpush1.bf16.msra.mxu0 0
        %712 = vmatprep.subr.bf16.mxu0 0
        %713 = vmatpush1.bf16.msra.mxu0 %v693
        %714 = vmatprep.subr.bf16.mxu0 0
        %715 = vmatpush1.bf16.msra.mxu0 %v692
        %716 = vmatprep.subr.bf16.mxu0 0
        %717 = vmatpush2.bf16.msra.mxu0 0
        %718 = vmatprep.subr.bf16.mxu0 0
        %719 = vmatpush2.bf16.msra.mxu0 0
        %720 = vmatprep.subr.bf16.mxu0 0
        %721 = vmatpush2.bf16.msra.mxu0 0
        %722 = vmatprep.subr.bf16.mxu0 0
        %723 = vmatpush2.bf16.msra.mxu0 0
        %724 = vmatprep.subr.bf16.mxu0 0
        %725 = vmatpush2.bf16.msra.mxu0 0
        %726 = vmatprep.subr.bf16.mxu0 0
        %727 = vmatpush2.bf16.msra.mxu0 0
        %728 = vmatprep.subr.bf16.mxu0 0
        %729 = vmatpush2.bf16.msra.mxu0 0
        %730 = vmatprep.subr.bf16.mxu0 0
        %731 = vmatpush2.bf16.msra.mxu0 0
        %732 = vmatprep.mubr.bf16.mxu0 0
        %733 = vmatmul.mubr.bf16.gmra.mxu0 %v698
        %v734 = vpop.f32.mrf.mxu0
        %v735 = vadd.f32 %v682, %v734
        %v736 = vpop.f32.mrf.mxu0
        %v737 = vpop.f32.mrf.mxu0
        %v738 = vadd.f32 %v682, %v737
        %v739 = vpop.f32.mrf.mxu0
        %740 = vdwg.mxu0
        %v741 = vpack.c.bf16 %v735, %v735
        %743 = vrot.lane.b32.xlu0 %v741, 96
        %v744 = vpop.permute.xlu0 %743
        %vm745 = vcmask 64512
        %v747 = vsel %vm745, %v741, 0
        %v750 = vsel %vm745, %v744, 0
        %752 = vmatprep.subr.bf16.mxu0 0
        %753 = vmatpush1.bf16.xpose.msra.mxu0 0
        %754 = vmatprep.subr.bf16.mxu0 0
        %755 = vmatpush1.bf16.xpose.msra.mxu0 0
        %756 = vmatprep.subr.bf16.mxu0 0
        %757 = vmatpush1.bf16.xpose.msra.mxu0 0
        %758 = vmatprep.subr.bf16.mxu0 0
        %759 = vmatpush1.bf16.xpose.msra.mxu0 0
        %760 = vmatprep.subr.bf16.mxu0 0
        %761 = vmatpush1.bf16.xpose.msra.mxu0 0
        %762 = vmatprep.subr.bf16.mxu0 0
        %763 = vmatpush1.bf16.xpose.msra.mxu0 0
        %764 = vmatprep.subr.bf16.mxu0 0
        %765 = vmatpush1.bf16.xpose.msra.mxu0 0
        %766 = vmatprep.subr.bf16.mxu0 0
        %767 = vmatpush1.bf16.xpose.msra.mxu0 %v750
        %768 = vmatprep.subr.bf16.mxu0 0
        %769 = vmatpush2.bf16.xpose.msra.mxu0 0
        %770 = vmatprep.subr.bf16.mxu0 0
        %771 = vmatpush2.bf16.xpose.msra.mxu0 0
        %772 = vmatprep.subr.bf16.mxu0 0
        %773 = vmatpush2.bf16.xpose.msra.mxu0 0
        %774 = vmatprep.subr.bf16.mxu0 0
        %775 = vmatpush2.bf16.xpose.msra.mxu0 0
        %776 = vmatprep.subr.bf16.mxu0 0
        %777 = vmatpush2.bf16.xpose.msra.mxu0 0
        %778 = vmatprep.subr.bf16.mxu0 0
        %779 = vmatpush2.bf16.xpose.msra.mxu0 0
        %780 = vmatprep.subr.bf16.mxu0 0
        %781 = vmatpush2.bf16.xpose.msra.mxu0 0
        %782 = vmatprep.subr.bf16.mxu0 0
        %783 = vmatpush2.bf16.xpose.msra.mxu0 0
        %784 = vmatprep.mubr.bf16.mxu0 0
        %785 = vmatmul.mubr.bf16.gmra.mxu0 %v747
        %v786 = vpop.f32.mrf.mxu0
        %v787 = vadd.f32 0.0, %v786
        %v788 = vpop.f32.mrf.mxu0
        %v789 = vpop.f32.mrf.mxu0
        %v790 = vpop.f32.mrf.mxu0
        %791 = vdwg.mxu0
        %792 = vrot.lane.b32.xlu0 %v741, 120
        %v793 = vpop.permute.xlu0 %792
        %794 = vrot.lane.b32.xlu0 %v741, 88
        %v795 = vpop.permute.xlu0 %794
        %v797 = vsel %vm745, %v793, 0
        %v800 = vsel %vm745, %v795, 0
        %802 = vmatprep.subr.bf16.mxu0 0
        %803 = vmatpush1.bf16.xpose.msra.mxu0 0
        %804 = vmatprep.subr.bf16.mxu0 0
        %805 = vmatpush1.bf16.xpose.msra.mxu0 0
        %806 = vmatprep.subr.bf16.mxu0 0
        %807 = vmatpush1.bf16.xpose.msra.mxu0 0
        %808 = vmatprep.subr.bf16.mxu0 0
        %809 = vmatpush1.bf16.xpose.msra.mxu0 0
        %810 = vmatprep.subr.bf16.mxu0 0
        %811 = vmatpush1.bf16.xpose.msra.mxu0 0
        %812 = vmatprep.subr.bf16.mxu0 0
        %813 = vmatpush1.bf16.xpose.msra.mxu0 0
        %814 = vmatprep.subr.bf16.mxu0 0
        %815 = vmatpush1.bf16.xpose.msra.mxu0 0
        %816 = vmatprep.subr.bf16.mxu0 0
        %817 = vmatpush1.bf16.xpose.msra.mxu0 %v800
        %818 = vmatprep.subr.bf16.mxu0 0
        %819 = vmatpush2.bf16.xpose.msra.mxu0 0
        %820 = vmatprep.subr.bf16.mxu0 0
        %821 = vmatpush2.bf16.xpose.msra.mxu0 0
        %822 = vmatprep.subr.bf16.mxu0 0
        %823 = vmatpush2.bf16.xpose.msra.mxu0 0
        %824 = vmatprep.subr.bf16.mxu0 0
        %825 = vmatpush2.bf16.xpose.msra.mxu0 0
        %826 = vmatprep.subr.bf16.mxu0 0
        %827 = vmatpush2.bf16.xpose.msra.mxu0 0
        %828 = vmatprep.subr.bf16.mxu0 0
        %829 = vmatpush2.bf16.xpose.msra.mxu0 0
        %830 = vmatprep.subr.bf16.mxu0 0
        %831 = vmatpush2.bf16.xpose.msra.mxu0 0
        %832 = vmatprep.subr.bf16.mxu0 0
        %833 = vmatpush2.bf16.xpose.msra.mxu0 0
        %834 = vmatprep.mubr.bf16.mxu0 0
        %835 = vmatmul.mubr.bf16.gmra.mxu0 %v797
        %v836 = vpop.f32.mrf.mxu0
        %v837 = vadd.f32 0.0, %v836
        %v838 = vpop.f32.mrf.mxu0
        %v839 = vpop.f32.mrf.mxu0
        %v840 = vpop.f32.mrf.mxu0
        %841 = vdwg.mxu0
        %842 = vrot.lane.b32.xlu0 %v741, 112
        %v843 = vpop.permute.xlu0 %842
        %844 = vrot.lane.b32.xlu0 %v741, 80
        %v845 = vpop.permute.xlu0 %844
        %v847 = vsel %vm745, %v843, 0
        %v850 = vsel %vm745, %v845, 0
        %852 = vmatprep.subr.bf16.mxu0 0
        %853 = vmatpush1.bf16.xpose.msra.mxu0 0
        %854 = vmatprep.subr.bf16.mxu0 0
        %855 = vmatpush1.bf16.xpose.msra.mxu0 0
        %856 = vmatprep.subr.bf16.mxu0 0
        %857 = vmatpush1.bf16.xpose.msra.mxu0 0
        %858 = vmatprep.subr.bf16.mxu0 0
        %859 = vmatpush1.bf16.xpose.msra.mxu0 0
        %860 = vmatprep.subr.bf16.mxu0 0
        %861 = vmatpush1.bf16.xpose.msra.mxu0 0
        %862 = vmatprep.subr.bf16.mxu0 0
        %863 = vmatpush1.bf16.xpose.msra.mxu0 0
        %864 = vmatprep.subr.bf16.mxu0 0
        %865 = vmatpush1.bf16.xpose.msra.mxu0 0
        %866 = vmatprep.subr.bf16.mxu0 0
        %867 = vmatpush1.bf16.xpose.msra.mxu0 %v850
        %868 = vmatprep.subr.bf16.mxu0 0
        %869 = vmatpush2.bf16.xpose.msra.mxu0 0
        %870 = vmatprep.subr.bf16.mxu0 0
        %871 = vmatpush2.bf16.xpose.msra.mxu0 0
        %872 = vmatprep.subr.bf16.mxu0 0
        %873 = vmatpush2.bf16.xpose.msra.mxu0 0
        %874 = vmatprep.subr.bf16.mxu0 0
        %875 = vmatpush2.bf16.xpose.msra.mxu0 0
        %876 = vmatprep.subr.bf16.mxu0 0
        %877 = vmatpush2.bf16.xpose.msra.mxu0 0
        %878 = vmatprep.subr.bf16.mxu0 0
        %879 = vmatpush2.bf16.xpose.msra.mxu0 0
        %880 = vmatprep.subr.bf16.mxu0 0
        %881 = vmatpush2.bf16.xpose.msra.mxu0 0
        %882 = vmatprep.subr.bf16.mxu0 0
        %883 = vmatpush2.bf16.xpose.msra.mxu0 0
        %884 = vmatprep.mubr.bf16.mxu0 0
        %885 = vmatmul.mubr.bf16.gmra.mxu0 %v847
        %v886 = vpop.f32.mrf.mxu0
        %v887 = vadd.f32 0.0, %v886
        %v888 = vpop.f32.mrf.mxu0
        %v889 = vpop.f32.mrf.mxu0
        %v890 = vpop.f32.mrf.mxu0
        %891 = vdwg.mxu0
        %892 = vrot.lane.b32.xlu0 %v741, 104
        %v893 = vpop.permute.xlu0 %892
        %894 = vrot.lane.b32.xlu0 %v741, 72
        %v895 = vpop.permute.xlu0 %894
        %v897 = vsel %vm745, %v893, 0
        %v900 = vsel %vm745, %v895, 0
        %902 = vmatprep.subr.bf16.mxu0 0
        %903 = vmatpush1.bf16.xpose.msra.mxu0 0
        %904 = vmatprep.subr.bf16.mxu0 0
        %905 = vmatpush1.bf16.xpose.msra.mxu0 0
        %906 = vmatprep.subr.bf16.mxu0 0
        %907 = vmatpush1.bf16.xpose.msra.mxu0 0
        %908 = vmatprep.subr.bf16.mxu0 0
        %909 = vmatpush1.bf16.xpose.msra.mxu0 0
        %910 = vmatprep.subr.bf16.mxu0 0
        %911 = vmatpush1.bf16.xpose.msra.mxu0 0
        %912 = vmatprep.subr.bf16.mxu0 0
        %913 = vmatpush1.bf16.xpose.msra.mxu0 0
        %914 = vmatprep.subr.bf16.mxu0 0
        %915 = vmatpush1.bf16.xpose.msra.mxu0 0
        %916 = vmatprep.subr.bf16.mxu0 0
        %917 = vmatpush1.bf16.xpose.msra.mxu0 %v900
        %918 = vmatprep.subr.bf16.mxu0 0
        %919 = vmatpush2.bf16.xpose.msra.mxu0 0
        %920 = vmatprep.subr.bf16.mxu0 0
        %921 = vmatpush2.bf16.xpose.msra.mxu0 0
        %922 = vmatprep.subr.bf16.mxu0 0
        %923 = vmatpush2.bf16.xpose.msra.mxu0 0
        %924 = vmatprep.subr.bf16.mxu0 0
        %925 = vmatpush2.bf16.xpose.msra.mxu0 0
        %926 = vmatprep.subr.bf16.mxu0 0
        %927 = vmatpush2.bf16.xpose.msra.mxu0 0
        %928 = vmatprep.subr.bf16.mxu0 0
        %929 = vmatpush2.bf16.xpose.msra.mxu0 0
        %930 = vmatprep.subr.bf16.mxu0 0
        %931 = vmatpush2.bf16.xpose.msra.mxu0 0
        %932 = vmatprep.subr.bf16.mxu0 0
        %933 = vmatpush2.bf16.xpose.msra.mxu0 0
        %934 = vmatprep.mubr.bf16.mxu0 0
        %935 = vmatmul.mubr.bf16.gmra.mxu0 %v897
        %v936 = vpop.f32.mrf.mxu0
        %v937 = vadd.f32 0.0, %v936
        %v938 = vpop.f32.mrf.mxu0
        %v939 = vpop.f32.mrf.mxu0
        %v940 = vpop.f32.mrf.mxu0
        %941 = vdwg.mxu0
        %v942 = vpack.c.bf16 %v738, %v738
        %944 = vrot.lane.b32.xlu0 %v942, 96
        %v945 = vpop.permute.xlu0 %944
        %v947 = vsel %vm745, %v942, 0
        %v950 = vsel %vm745, %v945, 0
        %952 = vmatprep.subr.bf16.mxu0 0
        %953 = vmatpush1.bf16.xpose.msra.mxu0 0
        %954 = vmatprep.subr.bf16.mxu0 0
        %955 = vmatpush1.bf16.xpose.msra.mxu0 0
        %956 = vmatprep.subr.bf16.mxu0 0
        %957 = vmatpush1.bf16.xpose.msra.mxu0 0
        %958 = vmatprep.subr.bf16.mxu0 0
        %959 = vmatpush1.bf16.xpose.msra.mxu0 0
        %960 = vmatprep.subr.bf16.mxu0 0
        %961 = vmatpush1.bf16.xpose.msra.mxu0 0
        %962 = vmatprep.subr.bf16.mxu0 0
        %963 = vmatpush1.bf16.xpose.msra.mxu0 0
        %964 = vmatprep.subr.bf16.mxu0 0
        %965 = vmatpush1.bf16.xpose.msra.mxu0 0
        %966 = vmatprep.subr.bf16.mxu0 0
        %967 = vmatpush1.bf16.xpose.msra.mxu0 %v950
        %968 = vmatprep.subr.bf16.mxu0 0
        %969 = vmatpush2.bf16.xpose.msra.mxu0 0
        %970 = vmatprep.subr.bf16.mxu0 0
        %971 = vmatpush2.bf16.xpose.msra.mxu0 0
        %972 = vmatprep.subr.bf16.mxu0 0
        %973 = vmatpush2.bf16.xpose.msra.mxu0 0
        %974 = vmatprep.subr.bf16.mxu0 0
        %975 = vmatpush2.bf16.xpose.msra.mxu0 0
        %976 = vmatprep.subr.bf16.mxu0 0
        %977 = vmatpush2.bf16.xpose.msra.mxu0 0
        %978 = vmatprep.subr.bf16.mxu0 0
        %979 = vmatpush2.bf16.xpose.msra.mxu0 0
        %980 = vmatprep.subr.bf16.mxu0 0
        %981 = vmatpush2.bf16.xpose.msra.mxu0 0
        %982 = vmatprep.subr.bf16.mxu0 0
        %983 = vmatpush2.bf16.xpose.msra.mxu0 0
        %984 = vmatprep.mubr.bf16.mxu0 0
        %985 = vmatmul.mubr.bf16.gmra.mxu0 %v947
        %v986 = vpop.f32.mrf.mxu0
        %v987 = vadd.f32 0.0, %v986
        %v988 = vpop.f32.mrf.mxu0
        %v989 = vpop.f32.mrf.mxu0
        %v990 = vpop.f32.mrf.mxu0
        %991 = vdwg.mxu0
        %992 = vrot.lane.b32.xlu0 %v942, 120
        %v993 = vpop.permute.xlu0 %992
        %994 = vrot.lane.b32.xlu0 %v942, 88
        %v995 = vpop.permute.xlu0 %994
        %v997 = vsel %vm745, %v993, 0
        %v1000 = vsel %vm745, %v995, 0
        %1002 = vmatprep.subr.bf16.mxu0 0
        %1003 = vmatpush1.bf16.xpose.msra.mxu0 0
        %1004 = vmatprep.subr.bf16.mxu0 0
        %1005 = vmatpush1.bf16.xpose.msra.mxu0 0
        %1006 = vmatprep.subr.bf16.mxu0 0
        %1007 = vmatpush1.bf16.xpose.msra.mxu0 0
        %1008 = vmatprep.subr.bf16.mxu0 0
        %1009 = vmatpush1.bf16.xpose.msra.mxu0 0
        %1010 = vmatprep.subr.bf16.mxu0 0
        %1011 = vmatpush1.bf16.xpose.msra.mxu0 0
        %1012 = vmatprep.subr.bf16.mxu0 0
        %1013 = vmatpush1.bf16.xpose.msra.mxu0 0
        %1014 = vmatprep.subr.bf16.mxu0 0
        %1015 = vmatpush1.bf16.xpose.msra.mxu0 0
        %1016 = vmatprep.subr.bf16.mxu0 0
        %1017 = vmatpush1.bf16.xpose.msra.mxu0 %v1000
        %1018 = vmatprep.subr.bf16.mxu0 0
        %1019 = vmatpush2.bf16.xpose.msra.mxu0 0
        %1020 = vmatprep.subr.bf16.mxu0 0
        %1021 = vmatpush2.bf16.xpose.msra.mxu0 0
        %1022 = vmatprep.subr.bf16.mxu0 0
        %1023 = vmatpush2.bf16.xpose.msra.mxu0 0
        %1024 = vmatprep.subr.bf16.mxu0 0
        %1025 = vmatpush2.bf16.xpose.msra.mxu0 0
        %1026 = vmatprep.subr.bf16.mxu0 0
        %1027 = vmatpush2.bf16.xpose.msra.mxu0 0
        %1028 = vmatprep.subr.bf16.mxu0 0
        %1029 = vmatpush2.bf16.xpose.msra.mxu0 0
        %1030 = vmatprep.subr.bf16.mxu0 0
        %1031 = vmatpush2.bf16.xpose.msra.mxu0 0
        %1032 = vmatprep.subr.bf16.mxu0 0
        %1033 = vmatpush2.bf16.xpose.msra.mxu0 0
        %1034 = vmatprep.mubr.bf16.mxu0 0
        %1035 = vmatmul.mubr.bf16.gmra.mxu0 %v997
        %v1036 = vpop.f32.mrf.mxu0
        %v1037 = vadd.f32 0.0, %v1036
        %v1038 = vpop.f32.mrf.mxu0
        %v1039 = vpop.f32.mrf.mxu0
        %v1040 = vpop.f32.mrf.mxu0
        %1041 = vdwg.mxu0
        %1042 = vrot.lane.b32.xlu0 %v942, 112
        %v1043 = vpop.permute.xlu0 %1042
        %1044 = vrot.lane.b32.xlu0 %v942, 80
        %v1045 = vpop.permute.xlu0 %1044
        %v1047 = vsel %vm745, %v1043, 0
        %v1050 = vsel %vm745, %v1045, 0
        %1052 = vmatprep.subr.bf16.mxu0 0
        %1053 = vmatpush1.bf16.xpose.msra.mxu0 0
        %1054 = vmatprep.subr.bf16.mxu0 0
        %1055 = vmatpush1.bf16.xpose.msra.mxu0 0
        %1056 = vmatprep.subr.bf16.mxu0 0
        %1057 = vmatpush1.bf16.xpose.msra.mxu0 0
        %1058 = vmatprep.subr.bf16.mxu0 0
        %1059 = vmatpush1.bf16.xpose.msra.mxu0 0
        %1060 = vmatprep.subr.bf16.mxu0 0
        %1061 = vmatpush1.bf16.xpose.msra.mxu0 0
        %1062 = vmatprep.subr.bf16.mxu0 0
        %1063 = vmatpush1.bf16.xpose.msra.mxu0 0
        %1064 = vmatprep.subr.bf16.mxu0 0
        %1065 = vmatpush1.bf16.xpose.msra.mxu0 0
        %1066 = vmatprep.subr.bf16.mxu0 0
        %1067 = vmatpush1.bf16.xpose.msra.mxu0 %v1050
        %1068 = vmatprep.subr.bf16.mxu0 0
        %1069 = vmatpush2.bf16.xpose.msra.mxu0 0
        %1070 = vmatprep.subr.bf16.mxu0 0
        %1071 = vmatpush2.bf16.xpose.msra.mxu0 0
        %1072 = vmatprep.subr.bf16.mxu0 0
        %1073 = vmatpush2.bf16.xpose.msra.mxu0 0
        %1074 = vmatprep.subr.bf16.mxu0 0
        %1075 = vmatpush2.bf16.xpose.msra.mxu0 0
        %1076 = vmatprep.subr.bf16.mxu0 0
        %1077 = vmatpush2.bf16.xpose.msra.mxu0 0
        %1078 = vmatprep.subr.bf16.mxu0 0
        %1079 = vmatpush2.bf16.xpose.msra.mxu0 0
        %1080 = vmatprep.subr.bf16.mxu0 0
        %1081 = vmatpush2.bf16.xpose.msra.mxu0 0
        %1082 = vmatprep.subr.bf16.mxu0 0
        %1083 = vmatpush2.bf16.xpose.msra.mxu0 0
        %1084 = vmatprep.mubr.bf16.mxu0 0
        %1085 = vmatmul.mubr.bf16.gmra.mxu0 %v1047
        %v1086 = vpop.f32.mrf.mxu0
        %v1087 = vadd.f32 0.0, %v1086
        %v1088 = vpop.f32.mrf.mxu0
        %v1089 = vpop.f32.mrf.mxu0
        %v1090 = vpop.f32.mrf.mxu0
        %1091 = vdwg.mxu0
        %1092 = vrot.lane.b32.xlu0 %v942, 104
        %v1093 = vpop.permute.xlu0 %1092
        %1094 = vrot.lane.b32.xlu0 %v942, 72
        %v1095 = vpop.permute.xlu0 %1094
        %v1097 = vsel %vm745, %v1093, 0
        %v1100 = vsel %vm745, %v1095, 0
        %1102 = vmatprep.subr.bf16.mxu0 0
        %1103 = vmatpush1.bf16.xpose.msra.mxu0 0
        %1104 = vmatprep.subr.bf16.mxu0 0
        %1105 = vmatpush1.bf16.xpose.msra.mxu0 0
        %1106 = vmatprep.subr.bf16.mxu0 0
        %1107 = vmatpush1.bf16.xpose.msra.mxu0 0
        %1108 = vmatprep.subr.bf16.mxu0 0
        %1109 = vmatpush1.bf16.xpose.msra.mxu0 0
        %1110 = vmatprep.subr.bf16.mxu0 0
        %1111 = vmatpush1.bf16.xpose.msra.mxu0 0
        %1112 = vmatprep.subr.bf16.mxu0 0
        %1113 = vmatpush1.bf16.xpose.msra.mxu0 0
        %1114 = vmatprep.subr.bf16.mxu0 0
        %1115 = vmatpush1.bf16.xpose.msra.mxu0 0
        %1116 = vmatprep.subr.bf16.mxu0 0
        %1117 = vmatpush1.bf16.xpose.msra.mxu0 %v1100
        %1118 = vmatprep.subr.bf16.mxu0 0
        %1119 = vmatpush2.bf16.xpose.msra.mxu0 0
        %1120 = vmatprep.subr.bf16.mxu0 0
        %1121 = vmatpush2.bf16.xpose.msra.mxu0 0
        %1122 = vmatprep.subr.bf16.mxu0 0
        %1123 = vmatpush2.bf16.xpose.msra.mxu0 0
        %1124 = vmatprep.subr.bf16.mxu0 0
        %1125 = vmatpush2.bf16.xpose.msra.mxu0 0
        %1126 = vmatprep.subr.bf16.mxu0 0
        %1127 = vmatpush2.bf16.xpose.msra.mxu0 0
        %1128 = vmatprep.subr.bf16.mxu0 0
        %1129 = vmatpush2.bf16.xpose.msra.mxu0 0
        %1130 = vmatprep.subr.bf16.mxu0 0
        %1131 = vmatpush2.bf16.xpose.msra.mxu0 0
        %1132 = vmatprep.subr.bf16.mxu0 0
        %1133 = vmatpush2.bf16.xpose.msra.mxu0 0
        %1134 = vmatprep.mubr.bf16.mxu0 0
        %1135 = vmatmul.mubr.bf16.gmra.mxu0 %v1097
        %v1136 = vpop.f32.mrf.mxu0
        %v1137 = vadd.f32 0.0, %v1136
        %v1138 = vpop.f32.mrf.mxu0
        %v1139 = vpop.f32.mrf.mxu0
        %v1140 = vpop.f32.mrf.mxu0
        %1141 = vdwg.mxu0
        %v1142 = vsel %vm745, %v787, -inf
        %1143 = vmax.xlane.f32.xlu0 %v1142
        %v1144 = vpop.xlane.xlu0 %1143
        %v1145 = vsel %vm745, %v837, -inf
        %1146 = vmax.xlane.f32.xlu0 %v1145
        %v1147 = vpop.xlane.xlu0 %1146
        %v1148 = vsel %vm745, %v887, -inf
        %1149 = vmax.xlane.f32.xlu0 %v1148
        %v1150 = vpop.xlane.xlu0 %1149
        %v1151 = vsel %vm745, %v937, -inf
        %1152 = vmax.xlane.f32.xlu0 %v1151
        %v1153 = vpop.xlane.xlu0 %1152
        %v1154 = vsel %vm745, %v987, -inf
        %1155 = vmax.xlane.f32.xlu0 %v1154
        %v1156 = vpop.xlane.xlu0 %1155
        %v1157 = vsel %vm745, %v1037, -inf
        %1158 = vmax.xlane.f32.xlu0 %v1157
        %v1159 = vpop.xlane.xlu0 %1158
        %v1160 = vsel %vm745, %v1087, -inf
        %1161 = vmax.xlane.f32.xlu0 %v1160
        %v1162 = vpop.xlane.xlu0 %1161
        %v1163 = vsel %vm745, %v1137, -inf
        %1164 = vmax.xlane.f32.xlu0 %v1163
        %v1165 = vpop.xlane.xlu0 %1164
        %v1166 = vsub.f32 %v787, %v1144
        %v1167 = vsub.f32 %v837, %v1147
        %v1168 = vsub.f32 %v887, %v1150
        %v1169 = vsub.f32 %v937, %v1153
        %v1170 = vsub.f32 %v987, %v1156
        %v1171 = vsub.f32 %v1037, %v1159
        %v1172 = vsub.f32 %v1087, %v1162
        %v1173 = vsub.f32 %v1137, %v1165
        %v1174 = vmul.f32 %v1166, 1.442695
        %v1175 = vpow.pop %v1174
        %v1176 = vmul.f32 %v1167, 1.442695
        %v1177 = vpow.pop %v1176
        %v1178 = vmul.f32 %v1168, 1.442695
        %v1179 = vpow.pop %v1178
        %v1180 = vmul.f32 %v1169, 1.442695
        %v1181 = vpow.pop %v1180
        %v1182 = vmul.f32 %v1170, 1.442695
        %v1183 = vpow.pop %v1182
        %v1184 = vmul.f32 %v1171, 1.442695
        %v1185 = vpow.pop %v1184
        %v1186 = vmul.f32 %v1172, 1.442695
        %v1187 = vpow.pop %v1186
        %v1188 = vmul.f32 %v1173, 1.442695
        %v1189 = vpow.pop %v1188
        %v1190 = vsel %vm745, %v1175, 0.0
        %1191 = vadd.xlane.f32.xlu0 %v1190
        %v1192 = vpop.xlane.xlu0 %1191
        %v1193 = vsel %vm745, %v1177, 0.0
        %1194 = vadd.xlane.f32.xlu0 %v1193
        %v1195 = vpop.xlane.xlu0 %1194
        %v1196 = vsel %vm745, %v1179, 0.0
        %1197 = vadd.xlane.f32.xlu0 %v1196
        %v1198 = vpop.xlane.xlu0 %1197
        %v1199 = vsel %vm745, %v1181, 0.0
        %1200 = vadd.xlane.f32.xlu0 %v1199
        %v1201 = vpop.xlane.xlu0 %1200
        %v1202 = vsel %vm745, %v1183, 0.0
        %1203 = vadd.xlane.f32.xlu0 %v1202
        %v1204 = vpop.xlane.xlu0 %1203
        %v1205 = vsel %vm745, %v1185, 0.0
        %1206 = vadd.xlane.f32.xlu0 %v1205
        %v1207 = vpop.xlane.xlu0 %1206
        %v1208 = vsel %vm745, %v1187, 0.0
        %1209 = vadd.xlane.f32.xlu0 %v1208
        %v1210 = vpop.xlane.xlu0 %1209
        %v1211 = vsel %vm745, %v1189, 0.0
        %1212 = vadd.xlane.f32.xlu0 %v1211
        %v1213 = vpop.xlane.xlu0 %1212
        %v1214 = vrcp.pop %v1192
        %v1215 = vrcp.pop %v1195
        %v1216 = vrcp.pop %v1198
        %v1217 = vrcp.pop %v1201
        %v1218 = vrcp.pop %v1204
        %v1219 = vrcp.pop %v1207
        %v1220 = vrcp.pop %v1210
        %v1221 = vrcp.pop %v1213
        %v1222 = vmul.f32 %v1175, %v1214
        %v1223 = vmul.f32 %v1177, %v1215
        %v1224 = vmul.f32 %v1179, %v1216
        %v1225 = vmul.f32 %v1181, %v1217
        %v1226 = vmul.f32 %v1183, %v1218
        %v1227 = vmul.f32 %v1185, %v1219
        %v1228 = vmul.f32 %v1187, %v1220
        %v1229 = vmul.f32 %v1189, %v1221
        %v1230 = vpack.c.bf16 %v1222, %v1222
        %1231 = vrot.lane.b32.xlu0 %v741, 64
        %v1232 = vpop.permute.xlu0 %1231
        %v1234 = vsel %vm745, %v1230, 0
        %vm1236 = vcmask 1043456
        %v1238 = vsel %vm1236, %v1232, 0
        %1240 = vmatprep.subr.bf16.mxu0 0
        %1241 = vmatpush1.bf16.msra.mxu0 0
        %1242 = vmatprep.subr.bf16.mxu0 0
        %1243 = vmatpush1.bf16.msra.mxu0 0
        %1244 = vmatprep.subr.bf16.mxu0 0
        %1245 = vmatpush1.bf16.msra.mxu0 0
        %1246 = vmatprep.subr.bf16.mxu0 0
        %1247 = vmatpush1.bf16.msra.mxu0 0
        %1248 = vmatprep.subr.bf16.mxu0 0
        %1249 = vmatpush1.bf16.msra.mxu0 0
        %1250 = vmatprep.subr.bf16.mxu0 0
        %1251 = vmatpush1.bf16.msra.mxu0 0
        %1252 = vmatprep.subr.bf16.mxu0 0
        %1253 = vmatpush1.bf16.msra.mxu0 0
        %1254 = vmatprep.subr.bf16.mxu0 0
        %1255 = vmatpush1.bf16.msra.mxu0 %v1238
        %1256 = vmatprep.subr.bf16.mxu0 0
        %1257 = vmatpush2.bf16.msra.mxu0 0
        %1258 = vmatprep.subr.bf16.mxu0 0
        %1259 = vmatpush2.bf16.msra.mxu0 0
        %1260 = vmatprep.subr.bf16.mxu0 0
        %1261 = vmatpush2.bf16.msra.mxu0 0
        %1262 = vmatprep.subr.bf16.mxu0 0
        %1263 = vmatpush2.bf16.msra.mxu0 0
        %1264 = vmatprep.subr.bf16.mxu0 0
        %1265 = vmatpush2.bf16.msra.mxu0 0
        %1266 = vmatprep.subr.bf16.mxu0 0
        %1267 = vmatpush2.bf16.msra.mxu0 0
        %1268 = vmatprep.subr.bf16.mxu0 0
        %1269 = vmatpush2.bf16.msra.mxu0 0
        %1270 = vmatprep.subr.bf16.mxu0 0
        %1271 = vmatpush2.bf16.msra.mxu0 0
        %1272 = vmatprep.mubr.bf16.mxu0 0
        %1273 = vmatmul.mubr.bf16.gmra.mxu0 %v1234
        %v1274 = vpop.f32.mrf.mxu0
        %v1275 = vadd.f32 0.0, %v1274
        %v1276 = vpop.f32.mrf.mxu0
        %v1277 = vpop.f32.mrf.mxu0
        %v1278 = vpop.f32.mrf.mxu0
        %1279 = vdwg.mxu0
        %v1280 = vpack.c.bf16 %v1275, %v1275
        %v1281 = vpack.c.bf16 %v1223, %v1223
        %1282 = vrot.lane.b32.xlu0 %v741, 56
        %v1283 = vpop.permute.xlu0 %1282
        %v1285 = vsel %vm745, %v1281, 0
        %v1288 = vsel %vm1236, %v1283, 0
        %1290 = vmatprep.subr.bf16.mxu0 0
        %1291 = vmatpush1.bf16.msra.mxu0 0
        %1292 = vmatprep.subr.bf16.mxu0 0
        %1293 = vmatpush1.bf16.msra.mxu0 0
        %1294 = vmatprep.subr.bf16.mxu0 0
        %1295 = vmatpush1.bf16.msra.mxu0 0
        %1296 = vmatprep.subr.bf16.mxu0 0
        %1297 = vmatpush1.bf16.msra.mxu0 0
        %1298 = vmatprep.subr.bf16.mxu0 0
        %1299 = vmatpush1.bf16.msra.mxu0 0
        %1300 = vmatprep.subr.bf16.mxu0 0
        %1301 = vmatpush1.bf16.msra.mxu0 0
        %1302 = vmatprep.subr.bf16.mxu0 0
        %1303 = vmatpush1.bf16.msra.mxu0 0
        %1304 = vmatprep.subr.bf16.mxu0 0
        %1305 = vmatpush1.bf16.msra.mxu0 %v1288
        %1306 = vmatprep.subr.bf16.mxu0 0
        %1307 = vmatpush2.bf16.msra.mxu0 0
        %1308 = vmatprep.subr.bf16.mxu0 0
        %1309 = vmatpush2.bf16.msra.mxu0 0
        %1310 = vmatprep.subr.bf16.mxu0 0
        %1311 = vmatpush2.bf16.msra.mxu0 0
        %1312 = vmatprep.subr.bf16.mxu0 0
        %1313 = vmatpush2.bf16.msra.mxu0 0
        %1314 = vmatprep.subr.bf16.mxu0 0
        %1315 = vmatpush2.bf16.msra.mxu0 0
        %1316 = vmatprep.subr.bf16.mxu0 0
        %1317 = vmatpush2.bf16.msra.mxu0 0
        %1318 = vmatprep.subr.bf16.mxu0 0
        %1319 = vmatpush2.bf16.msra.mxu0 0
        %1320 = vmatprep.subr.bf16.mxu0 0
        %1321 = vmatpush2.bf16.msra.mxu0 0
        %1322 = vmatprep.mubr.bf16.mxu0 0
        %1323 = vmatmul.mubr.bf16.gmra.mxu0 %v1285
        %v1324 = vpop.f32.mrf.mxu0
        %v1325 = vadd.f32 0.0, %v1324
        %v1326 = vpop.f32.mrf.mxu0
        %v1327 = vpop.f32.mrf.mxu0
        %v1328 = vpop.f32.mrf.mxu0
        %1329 = vdwg.mxu0
        %v1330 = vpack.c.bf16 %v1325, %v1325
        %v1332 = vsel %vm745, %v1330, 0
        %v1335 = vsel %vm1236, %v659, 0
        %1337 = vmatprep.subr.bf16.mxu0 0
        %1338 = vmatpush1.bf16.msra.mxu0 0
        %1339 = vmatprep.subr.bf16.mxu0 0
        %1340 = vmatpush1.bf16.msra.mxu0 0
        %1341 = vmatprep.subr.bf16.mxu0 0
        %1342 = vmatpush1.bf16.msra.mxu0 0
        %1343 = vmatprep.subr.bf16.mxu0 0
        %1344 = vmatpush1.bf16.msra.mxu0 0
        %1345 = vmatprep.subr.bf16.mxu0 0
        %1346 = vmatpush1.bf16.msra.mxu0 0
        %1347 = vmatprep.subr.bf16.mxu0 0
        %1348 = vmatpush1.bf16.msra.mxu0 0
        %1349 = vmatprep.subr.bf16.mxu0 0
        %1350 = vmatpush1.bf16.msra.mxu0 0
        %1351 = vmatprep.subr.bf16.mxu0 0
        %1352 = vmatpush1.bf16.msra.mxu0 %v1335
        %1353 = vmatprep.subr.bf16.mxu0 0
        %1354 = vmatpush2.bf16.msra.mxu0 0
        %1355 = vmatprep.subr.bf16.mxu0 0
        %1356 = vmatpush2.bf16.msra.mxu0 0
        %1357 = vmatprep.subr.bf16.mxu0 0
        %1358 = vmatpush2.bf16.msra.mxu0 0
        %1359 = vmatprep.subr.bf16.mxu0 0
        %1360 = vmatpush2.bf16.msra.mxu0 0
        %1361 = vmatprep.subr.bf16.mxu0 0
        %1362 = vmatpush2.bf16.msra.mxu0 0
        %1363 = vmatprep.subr.bf16.mxu0 0
        %1364 = vmatpush2.bf16.msra.mxu0 0
        %1365 = vmatprep.subr.bf16.mxu0 0
        %1366 = vmatpush2.bf16.msra.mxu0 0
        %1367 = vmatprep.subr.bf16.mxu0 0
        %1368 = vmatpush2.bf16.msra.mxu0 0
        %1369 = vmatprep.mubr.bf16.mxu0 0
        %1370 = vmatmul.mubr.bf16.gmra.mxu0 %v1332
        %v1371 = vpop.f32.mrf.mxu0
        %v1372 = vadd.f32 0.0, %v1371
        %v1373 = vpop.f32.mrf.mxu0
        %v1374 = vpop.f32.mrf.mxu0
        %v1375 = vpop.f32.mrf.mxu0
        %1376 = vdwg.mxu0
        %v1378 = vsel %vm745, %v1280, 0
        %v1381 = vsel %vm1236, %v658, 0
        %1383 = vmatprep.subr.bf16.mxu0 0
        %1384 = vmatpush1.bf16.msra.mxu0 0
        %1385 = vmatprep.subr.bf16.mxu0 0
        %1386 = vmatpush1.bf16.msra.mxu0 0
        %1387 = vmatprep.subr.bf16.mxu0 0
        %1388 = vmatpush1.bf16.msra.mxu0 0
        %1389 = vmatprep.subr.bf16.mxu0 0
        %1390 = vmatpush1.bf16.msra.mxu0 0
        %1391 = vmatprep.subr.bf16.mxu0 0
        %1392 = vmatpush1.bf16.msra.mxu0 0
        %1393 = vmatprep.subr.bf16.mxu0 0
        %1394 = vmatpush1.bf16.msra.mxu0 0
        %1395 = vmatprep.subr.bf16.mxu0 0
        %1396 = vmatpush1.bf16.msra.mxu0 0
        %1397 = vmatprep.subr.bf16.mxu0 0
        %1398 = vmatpush1.bf16.msra.mxu0 %v1381
        %1399 = vmatprep.subr.bf16.mxu0 0
        %1400 = vmatpush2.bf16.msra.mxu0 0
        %1401 = vmatprep.subr.bf16.mxu0 0
        %1402 = vmatpush2.bf16.msra.mxu0 0
        %1403 = vmatprep.subr.bf16.mxu0 0
        %1404 = vmatpush2.bf16.msra.mxu0 0
        %1405 = vmatprep.subr.bf16.mxu0 0
        %1406 = vmatpush2.bf16.msra.mxu0 0
        %1407 = vmatprep.subr.bf16.mxu0 0
        %1408 = vmatpush2.bf16.msra.mxu0 0
        %1409 = vmatprep.subr.bf16.mxu0 0
        %1410 = vmatpush2.bf16.msra.mxu0 0
        %1411 = vmatprep.subr.bf16.mxu0 0
        %1412 = vmatpush2.bf16.msra.mxu0 0
        %1413 = vmatprep.subr.bf16.mxu0 0
        %1414 = vmatpush2.bf16.msra.mxu0 0
        %1415 = vmatprep.mubr.bf16.mxu0 0
        %1416 = vmatmul.mubr.bf16.gmra.mxu0 %v1378
        %v1417 = vpop.f32.mrf.mxu0
        %v1418 = vadd.f32 %v1372, %v1417
        %v1419 = vpop.f32.mrf.mxu0
        %v1420 = vpop.f32.mrf.mxu0
        %v1421 = vpop.f32.mrf.mxu0
        %1422 = vdwg.mxu0
        %v1423 = vpack.c.bf16 %v1224, %v1224
        %1424 = vrot.lane.b32.xlu0 %v741, 48
        %v1425 = vpop.permute.xlu0 %1424
        %v1427 = vsel %vm745, %v1423, 0
        %v1430 = vsel %vm1236, %v1425, 0
        %1432 = vmatprep.subr.bf16.mxu0 0
        %1433 = vmatpush1.bf16.msra.mxu0 0
        %1434 = vmatprep.subr.bf16.mxu0 0
        %1435 = vmatpush1.bf16.msra.mxu0 0
        %1436 = vmatprep.subr.bf16.mxu0 0
        %1437 = vmatpush1.bf16.msra.mxu0 0
        %1438 = vmatprep.subr.bf16.mxu0 0
        %1439 = vmatpush1.bf16.msra.mxu0 0
        %1440 = vmatprep.subr.bf16.mxu0 0
        %1441 = vmatpush1.bf16.msra.mxu0 0
        %1442 = vmatprep.subr.bf16.mxu0 0
        %1443 = vmatpush1.bf16.msra.mxu0 0
        %1444 = vmatprep.subr.bf16.mxu0 0
        %1445 = vmatpush1.bf16.msra.mxu0 0
        %1446 = vmatprep.subr.bf16.mxu0 0
        %1447 = vmatpush1.bf16.msra.mxu0 %v1430
        %1448 = vmatprep.subr.bf16.mxu0 0
        %1449 = vmatpush2.bf16.msra.mxu0 0
        %1450 = vmatprep.subr.bf16.mxu0 0
        %1451 = vmatpush2.bf16.msra.mxu0 0
        %1452 = vmatprep.subr.bf16.mxu0 0
        %1453 = vmatpush2.bf16.msra.mxu0 0
        %1454 = vmatprep.subr.bf16.mxu0 0
        %1455 = vmatpush2.bf16.msra.mxu0 0
        %1456 = vmatprep.subr.bf16.mxu0 0
        %1457 = vmatpush2.bf16.msra.mxu0 0
        %1458 = vmatprep.subr.bf16.mxu0 0
        %1459 = vmatpush2.bf16.msra.mxu0 0
        %1460 = vmatprep.subr.bf16.mxu0 0
        %1461 = vmatpush2.bf16.msra.mxu0 0
        %1462 = vmatprep.subr.bf16.mxu0 0
        %1463 = vmatpush2.bf16.msra.mxu0 0
        %1464 = vmatprep.mubr.bf16.mxu0 0
        %1465 = vmatmul.mubr.bf16.gmra.mxu0 %v1427
        %v1466 = vpop.f32.mrf.mxu0
        %v1467 = vadd.f32 0.0, %v1466
        %v1468 = vpop.f32.mrf.mxu0
        %v1469 = vpop.f32.mrf.mxu0
        %v1470 = vpop.f32.mrf.mxu0
        %1471 = vdwg.mxu0
        %v1472 = vpack.c.bf16 %v1467, %v1467
        %v1474 = vsel %vm745, %v1472, 0
        %v1477 = vsel %vm1236, %v660, 0
        %1479 = vmatprep.subr.bf16.mxu0 0
        %1480 = vmatpush1.bf16.msra.mxu0 0
        %1481 = vmatprep.subr.bf16.mxu0 0
        %1482 = vmatpush1.bf16.msra.mxu0 0
        %1483 = vmatprep.subr.bf16.mxu0 0
        %1484 = vmatpush1.bf16.msra.mxu0 0
        %1485 = vmatprep.subr.bf16.mxu0 0
        %1486 = vmatpush1.bf16.msra.mxu0 0
        %1487 = vmatprep.subr.bf16.mxu0 0
        %1488 = vmatpush1.bf16.msra.mxu0 0
        %1489 = vmatprep.subr.bf16.mxu0 0
        %1490 = vmatpush1.bf16.msra.mxu0 0
        %1491 = vmatprep.subr.bf16.mxu0 0
        %1492 = vmatpush1.bf16.msra.mxu0 0
        %1493 = vmatprep.subr.bf16.mxu0 0
        %1494 = vmatpush1.bf16.msra.mxu0 %v1477
        %1495 = vmatprep.subr.bf16.mxu0 0
        %1496 = vmatpush2.bf16.msra.mxu0 0
        %1497 = vmatprep.subr.bf16.mxu0 0
        %1498 = vmatpush2.bf16.msra.mxu0 0
        %1499 = vmatprep.subr.bf16.mxu0 0
        %1500 = vmatpush2.bf16.msra.mxu0 0
        %1501 = vmatprep.subr.bf16.mxu0 0
        %1502 = vmatpush2.bf16.msra.mxu0 0
        %1503 = vmatprep.subr.bf16.mxu0 0
        %1504 = vmatpush2.bf16.msra.mxu0 0
        %1505 = vmatprep.subr.bf16.mxu0 0
        %1506 = vmatpush2.bf16.msra.mxu0 0
        %1507 = vmatprep.subr.bf16.mxu0 0
        %1508 = vmatpush2.bf16.msra.mxu0 0
        %1509 = vmatprep.subr.bf16.mxu0 0
        %1510 = vmatpush2.bf16.msra.mxu0 0
        %1511 = vmatprep.mubr.bf16.mxu0 0
        %1512 = vmatmul.mubr.bf16.gmra.mxu0 %v1474
        %v1513 = vpop.f32.mrf.mxu0
        %v1514 = vadd.f32 0.0, %v1513
        %v1515 = vpop.f32.mrf.mxu0
        %v1516 = vpop.f32.mrf.mxu0
        %v1517 = vpop.f32.mrf.mxu0
        %1518 = vdwg.mxu0
        %v1519 = vadd.f32 %v1418, %v1514
        %v1520 = vpack.c.bf16 %v1225, %v1225
        %1521 = vrot.lane.b32.xlu0 %v741, 40
        %v1522 = vpop.permute.xlu0 %1521
        %v1524 = vsel %vm745, %v1520, 0
        %v1527 = vsel %vm1236, %v1522, 0
        %1529 = vmatprep.subr.bf16.mxu0 0
        %1530 = vmatpush1.bf16.msra.mxu0 0
        %1531 = vmatprep.subr.bf16.mxu0 0
        %1532 = vmatpush1.bf16.msra.mxu0 0
        %1533 = vmatprep.subr.bf16.mxu0 0
        %1534 = vmatpush1.bf16.msra.mxu0 0
        %1535 = vmatprep.subr.bf16.mxu0 0
        %1536 = vmatpush1.bf16.msra.mxu0 0
        %1537 = vmatprep.subr.bf16.mxu0 0
        %1538 = vmatpush1.bf16.msra.mxu0 0
        %1539 = vmatprep.subr.bf16.mxu0 0
        %1540 = vmatpush1.bf16.msra.mxu0 0
        %1541 = vmatprep.subr.bf16.mxu0 0
        %1542 = vmatpush1.bf16.msra.mxu0 0
        %1543 = vmatprep.subr.bf16.mxu0 0
        %1544 = vmatpush1.bf16.msra.mxu0 %v1527
        %1545 = vmatprep.subr.bf16.mxu0 0
        %1546 = vmatpush2.bf16.msra.mxu0 0
        %1547 = vmatprep.subr.bf16.mxu0 0
        %1548 = vmatpush2.bf16.msra.mxu0 0
        %1549 = vmatprep.subr.bf16.mxu0 0
        %1550 = vmatpush2.bf16.msra.mxu0 0
        %1551 = vmatprep.subr.bf16.mxu0 0
        %1552 = vmatpush2.bf16.msra.mxu0 0
        %1553 = vmatprep.subr.bf16.mxu0 0
        %1554 = vmatpush2.bf16.msra.mxu0 0
        %1555 = vmatprep.subr.bf16.mxu0 0
        %1556 = vmatpush2.bf16.msra.mxu0 0
        %1557 = vmatprep.subr.bf16.mxu0 0
        %1558 = vmatpush2.bf16.msra.mxu0 0
        %1559 = vmatprep.subr.bf16.mxu0 0
        %1560 = vmatpush2.bf16.msra.mxu0 0
        %1561 = vmatprep.mubr.bf16.mxu0 0
        %1562 = vmatmul.mubr.bf16.gmra.mxu0 %v1524
        %v1563 = vpop.f32.mrf.mxu0
        %v1564 = vadd.f32 0.0, %v1563
        %v1565 = vpop.f32.mrf.mxu0
        %v1566 = vpop.f32.mrf.mxu0
        %v1567 = vpop.f32.mrf.mxu0
        %1568 = vdwg.mxu0
        %v1569 = vpack.c.bf16 %v1564, %v1564
        %v1571 = vsel %vm745, %v1569, 0
        %v1574 = vsel %vm1236, %v661, 0
        %1576 = vmatprep.subr.bf16.mxu0 0
        %1577 = vmatpush1.bf16.msra.mxu0 0
        %1578 = vmatprep.subr.bf16.mxu0 0
        %1579 = vmatpush1.bf16.msra.mxu0 0
        %1580 = vmatprep.subr.bf16.mxu0 0
        %1581 = vmatpush1.bf16.msra.mxu0 0
        %1582 = vmatprep.subr.bf16.mxu0 0
        %1583 = vmatpush1.bf16.msra.mxu0 0
        %1584 = vmatprep.subr.bf16.mxu0 0
        %1585 = vmatpush1.bf16.msra.mxu0 0
        %1586 = vmatprep.subr.bf16.mxu0 0
        %1587 = vmatpush1.bf16.msra.mxu0 0
        %1588 = vmatprep.subr.bf16.mxu0 0
        %1589 = vmatpush1.bf16.msra.mxu0 0
        %1590 = vmatprep.subr.bf16.mxu0 0
        %1591 = vmatpush1.bf16.msra.mxu0 %v1574
        %1592 = vmatprep.subr.bf16.mxu0 0
        %1593 = vmatpush2.bf16.msra.mxu0 0
        %1594 = vmatprep.subr.bf16.mxu0 0
        %1595 = vmatpush2.bf16.msra.mxu0 0
        %1596 = vmatprep.subr.bf16.mxu0 0
        %1597 = vmatpush2.bf16.msra.mxu0 0
        %1598 = vmatprep.subr.bf16.mxu0 0
        %1599 = vmatpush2.bf16.msra.mxu0 0
        %1600 = vmatprep.subr.bf16.mxu0 0
        %1601 = vmatpush2.bf16.msra.mxu0 0
        %1602 = vmatprep.subr.bf16.mxu0 0
        %1603 = vmatpush2.bf16.msra.mxu0 0
        %1604 = vmatprep.subr.bf16.mxu0 0
        %1605 = vmatpush2.bf16.msra.mxu0 0
        %1606 = vmatprep.subr.bf16.mxu0 0
        %1607 = vmatpush2.bf16.msra.mxu0 0
        %1608 = vmatprep.mubr.bf16.mxu0 0
        %1609 = vmatmul.mubr.bf16.gmra.mxu0 %v1571
        %v1610 = vpop.f32.mrf.mxu0
        %v1611 = vadd.f32 0.0, %v1610
        %v1612 = vpop.f32.mrf.mxu0
        %v1613 = vpop.f32.mrf.mxu0
        %v1614 = vpop.f32.mrf.mxu0
        %1615 = vdwg.mxu0
        %v1616 = vadd.f32 %v1519, %v1611
        %v1617 = vpack.c.bf16 %v1226, %v1226
        %1618 = vrot.lane.b32.xlu0 %v942, 64
        %v1619 = vpop.permute.xlu0 %1618
        %v1621 = vsel %vm745, %v1617, 0
        %v1624 = vsel %vm1236, %v1619, 0
        %1626 = vmatprep.subr.bf16.mxu0 0
        %1627 = vmatpush1.bf16.msra.mxu0 0
        %1628 = vmatprep.subr.bf16.mxu0 0
        %1629 = vmatpush1.bf16.msra.mxu0 0
        %1630 = vmatprep.subr.bf16.mxu0 0
        %1631 = vmatpush1.bf16.msra.mxu0 0
        %1632 = vmatprep.subr.bf16.mxu0 0
        %1633 = vmatpush1.bf16.msra.mxu0 0
        %1634 = vmatprep.subr.bf16.mxu0 0
        %1635 = vmatpush1.bf16.msra.mxu0 0
        %1636 = vmatprep.subr.bf16.mxu0 0
        %1637 = vmatpush1.bf16.msra.mxu0 0
        %1638 = vmatprep.subr.bf16.mxu0 0
        %1639 = vmatpush1.bf16.msra.mxu0 0
        %1640 = vmatprep.subr.bf16.mxu0 0
        %1641 = vmatpush1.bf16.msra.mxu0 %v1624
        %1642 = vmatprep.subr.bf16.mxu0 0
        %1643 = vmatpush2.bf16.msra.mxu0 0
        %1644 = vmatprep.subr.bf16.mxu0 0
        %1645 = vmatpush2.bf16.msra.mxu0 0
        %1646 = vmatprep.subr.bf16.mxu0 0
        %1647 = vmatpush2.bf16.msra.mxu0 0
        %1648 = vmatprep.subr.bf16.mxu0 0
        %1649 = vmatpush2.bf16.msra.mxu0 0
        %1650 = vmatprep.subr.bf16.mxu0 0
        %1651 = vmatpush2.bf16.msra.mxu0 0
        %1652 = vmatprep.subr.bf16.mxu0 0
        %1653 = vmatpush2.bf16.msra.mxu0 0
        %1654 = vmatprep.subr.bf16.mxu0 0
        %1655 = vmatpush2.bf16.msra.mxu0 0
        %1656 = vmatprep.subr.bf16.mxu0 0
        %1657 = vmatpush2.bf16.msra.mxu0 0
        %1658 = vmatprep.mubr.bf16.mxu0 0
        %1659 = vmatmul.mubr.bf16.gmra.mxu0 %v1621
        %v1660 = vpop.f32.mrf.mxu0
        %v1661 = vadd.f32 0.0, %v1660
        %v1662 = vpop.f32.mrf.mxu0
        %v1663 = vpop.f32.mrf.mxu0
        %v1664 = vpop.f32.mrf.mxu0
        %1665 = vdwg.mxu0
        %v1666 = vpack.c.bf16 %v1661, %v1661
        %v1667 = vpack.c.bf16 %v1227, %v1227
        %1668 = vrot.lane.b32.xlu0 %v942, 56
        %v1669 = vpop.permute.xlu0 %1668
        %v1671 = vsel %vm745, %v1667, 0
        %v1674 = vsel %vm1236, %v1669, 0
        %1676 = vmatprep.subr.bf16.mxu0 0
        %1677 = vmatpush1.bf16.msra.mxu0 0
        %1678 = vmatprep.subr.bf16.mxu0 0
        %1679 = vmatpush1.bf16.msra.mxu0 0
        %1680 = vmatprep.subr.bf16.mxu0 0
        %1681 = vmatpush1.bf16.msra.mxu0 0
        %1682 = vmatprep.subr.bf16.mxu0 0
        %1683 = vmatpush1.bf16.msra.mxu0 0
        %1684 = vmatprep.subr.bf16.mxu0 0
        %1685 = vmatpush1.bf16.msra.mxu0 0
        %1686 = vmatprep.subr.bf16.mxu0 0
        %1687 = vmatpush1.bf16.msra.mxu0 0
        %1688 = vmatprep.subr.bf16.mxu0 0
        %1689 = vmatpush1.bf16.msra.mxu0 0
        %1690 = vmatprep.subr.bf16.mxu0 0
        %1691 = vmatpush1.bf16.msra.mxu0 %v1674
        %1692 = vmatprep.subr.bf16.mxu0 0
        %1693 = vmatpush2.bf16.msra.mxu0 0
        %1694 = vmatprep.subr.bf16.mxu0 0
        %1695 = vmatpush2.bf16.msra.mxu0 0
        %1696 = vmatprep.subr.bf16.mxu0 0
        %1697 = vmatpush2.bf16.msra.mxu0 0
        %1698 = vmatprep.subr.bf16.mxu0 0
        %1699 = vmatpush2.bf16.msra.mxu0 0
        %1700 = vmatprep.subr.bf16.mxu0 0
        %1701 = vmatpush2.bf16.msra.mxu0 0
        %1702 = vmatprep.subr.bf16.mxu0 0
        %1703 = vmatpush2.bf16.msra.mxu0 0
        %1704 = vmatprep.subr.bf16.mxu0 0
        %1705 = vmatpush2.bf16.msra.mxu0 0
        %1706 = vmatprep.subr.bf16.mxu0 0
        %1707 = vmatpush2.bf16.msra.mxu0 0
        %1708 = vmatprep.mubr.bf16.mxu0 0
        %1709 = vmatmul.mubr.bf16.gmra.mxu0 %v1671
        %v1710 = vpop.f32.mrf.mxu0
        %v1711 = vadd.f32 0.0, %v1710
        %v1712 = vpop.f32.mrf.mxu0
        %v1713 = vpop.f32.mrf.mxu0
        %v1714 = vpop.f32.mrf.mxu0
        %1715 = vdwg.mxu0
        %v1716 = vpack.c.bf16 %v1711, %v1711
        %v1718 = vsel %vm745, %v1716, 0
        %1720 = vmatprep.subr.bf16.mxu0 0
        %1721 = vmatpush1.bf16.msra.mxu0 0
        %1722 = vmatprep.subr.bf16.mxu0 0
        %1723 = vmatpush1.bf16.msra.mxu0 0
        %1724 = vmatprep.subr.bf16.mxu0 0
        %1725 = vmatpush1.bf16.msra.mxu0 0
        %1726 = vmatprep.subr.bf16.mxu0 0
        %1727 = vmatpush1.bf16.msra.mxu0 0
        %1728 = vmatprep.subr.bf16.mxu0 0
        %1729 = vmatpush1.bf16.msra.mxu0 0
        %1730 = vmatprep.subr.bf16.mxu0 0
        %1731 = vmatpush1.bf16.msra.mxu0 0
        %1732 = vmatprep.subr.bf16.mxu0 0
        %1733 = vmatpush1.bf16.msra.mxu0 0
        %1734 = vmatprep.subr.bf16.mxu0 0
        %1735 = vmatpush1.bf16.msra.mxu0 %v1335
        %1736 = vmatprep.subr.bf16.mxu0 0
        %1737 = vmatpush2.bf16.msra.mxu0 0
        %1738 = vmatprep.subr.bf16.mxu0 0
        %1739 = vmatpush2.bf16.msra.mxu0 0
        %1740 = vmatprep.subr.bf16.mxu0 0
        %1741 = vmatpush2.bf16.msra.mxu0 0
        %1742 = vmatprep.subr.bf16.mxu0 0
        %1743 = vmatpush2.bf16.msra.mxu0 0
        %1744 = vmatprep.subr.bf16.mxu0 0
        %1745 = vmatpush2.bf16.msra.mxu0 0
        %1746 = vmatprep.subr.bf16.mxu0 0
        %1747 = vmatpush2.bf16.msra.mxu0 0
        %1748 = vmatprep.subr.bf16.mxu0 0
        %1749 = vmatpush2.bf16.msra.mxu0 0
        %1750 = vmatprep.subr.bf16.mxu0 0
        %1751 = vmatpush2.bf16.msra.mxu0 0
        %1752 = vmatprep.mubr.bf16.mxu0 0
        %1753 = vmatmul.mubr.bf16.gmra.mxu0 %v1718
        %v1754 = vpop.f32.mrf.mxu0
        %v1755 = vadd.f32 0.0, %v1754
        %v1756 = vpop.f32.mrf.mxu0
        %v1757 = vpop.f32.mrf.mxu0
        %v1758 = vpop.f32.mrf.mxu0
        %1759 = vdwg.mxu0
        %v1761 = vsel %vm745, %v1666, 0
        %1763 = vmatprep.subr.bf16.mxu0 0
        %1764 = vmatpush1.bf16.msra.mxu0 0
        %1765 = vmatprep.subr.bf16.mxu0 0
        %1766 = vmatpush1.bf16.msra.mxu0 0
        %1767 = vmatprep.subr.bf16.mxu0 0
        %1768 = vmatpush1.bf16.msra.mxu0 0
        %1769 = vmatprep.subr.bf16.mxu0 0
        %1770 = vmatpush1.bf16.msra.mxu0 0
        %1771 = vmatprep.subr.bf16.mxu0 0
        %1772 = vmatpush1.bf16.msra.mxu0 0
        %1773 = vmatprep.subr.bf16.mxu0 0
        %1774 = vmatpush1.bf16.msra.mxu0 0
        %1775 = vmatprep.subr.bf16.mxu0 0
        %1776 = vmatpush1.bf16.msra.mxu0 0
        %1777 = vmatprep.subr.bf16.mxu0 0
        %1778 = vmatpush1.bf16.msra.mxu0 %v1381
        %1779 = vmatprep.subr.bf16.mxu0 0
        %1780 = vmatpush2.bf16.msra.mxu0 0
        %1781 = vmatprep.subr.bf16.mxu0 0
        %1782 = vmatpush2.bf16.msra.mxu0 0
        %1783 = vmatprep.subr.bf16.mxu0 0
        %1784 = vmatpush2.bf16.msra.mxu0 0
        %1785 = vmatprep.subr.bf16.mxu0 0
        %1786 = vmatpush2.bf16.msra.mxu0 0
        %1787 = vmatprep.subr.bf16.mxu0 0
        %1788 = vmatpush2.bf16.msra.mxu0 0
        %1789 = vmatprep.subr.bf16.mxu0 0
        %1790 = vmatpush2.bf16.msra.mxu0 0
        %1791 = vmatprep.subr.bf16.mxu0 0
        %1792 = vmatpush2.bf16.msra.mxu0 0
        %1793 = vmatprep.subr.bf16.mxu0 0
        %1794 = vmatpush2.bf16.msra.mxu0 0
        %1795 = vmatprep.mubr.bf16.mxu0 0
        %1796 = vmatmul.mubr.bf16.gmra.mxu0 %v1761
        %v1797 = vpop.f32.mrf.mxu0
        %v1798 = vadd.f32 %v1755, %v1797
        %v1799 = vpop.f32.mrf.mxu0
        %v1800 = vpop.f32.mrf.mxu0
        %v1801 = vpop.f32.mrf.mxu0
        %1802 = vdwg.mxu0
        %v1803 = vpack.c.bf16 %v1228, %v1228
        %1804 = vrot.lane.b32.xlu0 %v942, 48
        %v1805 = vpop.permute.xlu0 %1804
        %v1807 = vsel %vm745, %v1803, 0
        %v1810 = vsel %vm1236, %v1805, 0
        %1812 = vmatprep.subr.bf16.mxu0 0
        %1813 = vmatpush1.bf16.msra.mxu0 0
        %1814 = vmatprep.subr.bf16.mxu0 0
        %1815 = vmatpush1.bf16.msra.mxu0 0
        %1816 = vmatprep.subr.bf16.mxu0 0
        %1817 = vmatpush1.bf16.msra.mxu0 0
        %1818 = vmatprep.subr.bf16.mxu0 0
        %1819 = vmatpush1.bf16.msra.mxu0 0
        %1820 = vmatprep.subr.bf16.mxu0 0
        %1821 = vmatpush1.bf16.msra.mxu0 0
        %1822 = vmatprep.subr.bf16.mxu0 0
        %1823 = vmatpush1.bf16.msra.mxu0 0
        %1824 = vmatprep.subr.bf16.mxu0 0
        %1825 = vmatpush1.bf16.msra.mxu0 0
        %1826 = vmatprep.subr.bf16.mxu0 0
        %1827 = vmatpush1.bf16.msra.mxu0 %v1810
        %1828 = vmatprep.subr.bf16.mxu0 0
        %1829 = vmatpush2.bf16.msra.mxu0 0
        %1830 = vmatprep.subr.bf16.mxu0 0
        %1831 = vmatpush2.bf16.msra.mxu0 0
        %1832 = vmatprep.subr.bf16.mxu0 0
        %1833 = vmatpush2.bf16.msra.mxu0 0
        %1834 = vmatprep.subr.bf16.mxu0 0
        %1835 = vmatpush2.bf16.msra.mxu0 0
        %1836 = vmatprep.subr.bf16.mxu0 0
        %1837 = vmatpush2.bf16.msra.mxu0 0
        %1838 = vmatprep.subr.bf16.mxu0 0
        %1839 = vmatpush2.bf16.msra.mxu0 0
        %1840 = vmatprep.subr.bf16.mxu0 0
        %1841 = vmatpush2.bf16.msra.mxu0 0
        %1842 = vmatprep.subr.bf16.mxu0 0
        %1843 = vmatpush2.bf16.msra.mxu0 0
        %1844 = vmatprep.mubr.bf16.mxu0 0
        %1845 = vmatmul.mubr.bf16.gmra.mxu0 %v1807
        %v1846 = vpop.f32.mrf.mxu0
        %v1847 = vadd.f32 0.0, %v1846
        %v1848 = vpop.f32.mrf.mxu0
        %v1849 = vpop.f32.mrf.mxu0
        %v1850 = vpop.f32.mrf.mxu0
        %1851 = vdwg.mxu0
        %v1852 = vpack.c.bf16 %v1847, %v1847
        %v1854 = vsel %vm745, %v1852, 0
        %1856 = vmatprep.subr.bf16.mxu0 0
        %1857 = vmatpush1.bf16.msra.mxu0 0
        %1858 = vmatprep.subr.bf16.mxu0 0
        %1859 = vmatpush1.bf16.msra.mxu0 0
        %1860 = vmatprep.subr.bf16.mxu0 0
        %1861 = vmatpush1.bf16.msra.mxu0 0
        %1862 = vmatprep.subr.bf16.mxu0 0
        %1863 = vmatpush1.bf16.msra.mxu0 0
        %1864 = vmatprep.subr.bf16.mxu0 0
        %1865 = vmatpush1.bf16.msra.mxu0 0
        %1866 = vmatprep.subr.bf16.mxu0 0
        %1867 = vmatpush1.bf16.msra.mxu0 0
        %1868 = vmatprep.subr.bf16.mxu0 0
        %1869 = vmatpush1.bf16.msra.mxu0 0
        %1870 = vmatprep.subr.bf16.mxu0 0
        %1871 = vmatpush1.bf16.msra.mxu0 %v1477
        %1872 = vmatprep.subr.bf16.mxu0 0
        %1873 = vmatpush2.bf16.msra.mxu0 0
        %1874 = vmatprep.subr.bf16.mxu0 0
        %1875 = vmatpush2.bf16.msra.mxu0 0
        %1876 = vmatprep.subr.bf16.mxu0 0
        %1877 = vmatpush2.bf16.msra.mxu0 0
        %1878 = vmatprep.subr.bf16.mxu0 0
        %1879 = vmatpush2.bf16.msra.mxu0 0
        %1880 = vmatprep.subr.bf16.mxu0 0
        %1881 = vmatpush2.bf16.msra.mxu0 0
        %1882 = vmatprep.subr.bf16.mxu0 0
        %1883 = vmatpush2.bf16.msra.mxu0 0
        %1884 = vmatprep.subr.bf16.mxu0 0
        %1885 = vmatpush2.bf16.msra.mxu0 0
        %1886 = vmatprep.subr.bf16.mxu0 0
        %1887 = vmatpush2.bf16.msra.mxu0 0
        %1888 = vmatprep.mubr.bf16.mxu0 0
        %1889 = vmatmul.mubr.bf16.gmra.mxu0 %v1854
        %v1890 = vpop.f32.mrf.mxu0
        %v1891 = vadd.f32 0.0, %v1890
        %v1892 = vpop.f32.mrf.mxu0
        %v1893 = vpop.f32.mrf.mxu0
        %v1894 = vpop.f32.mrf.mxu0
        %1895 = vdwg.mxu0
        %v1896 = vadd.f32 %v1798, %v1891
        %v1897 = vpack.c.bf16 %v1229, %v1229
        %1898 = vrot.lane.b32.xlu0 %v942, 40
        %v1899 = vpop.permute.xlu0 %1898
        %v1901 = vsel %vm745, %v1897, 0
        %v1904 = vsel %vm1236, %v1899, 0
        %1906 = vmatprep.subr.bf16.mxu0 0
        %1907 = vmatpush1.bf16.msra.mxu0 0
        %1908 = vmatprep.subr.bf16.mxu0 0
        %1909 = vmatpush1.bf16.msra.mxu0 0
        %1910 = vmatprep.subr.bf16.mxu0 0
        %1911 = vmatpush1.bf16.msra.mxu0 0
        %1912 = vmatprep.subr.bf16.mxu0 0
        %1913 = vmatpush1.bf16.msra.mxu0 0
        %1914 = vmatprep.subr.bf16.mxu0 0
        %1915 = vmatpush1.bf16.msra.mxu0 0
        %1916 = vmatprep.subr.bf16.mxu0 0
        %1917 = vmatpush1.bf16.msra.mxu0 0
        %1918 = vmatprep.subr.bf16.mxu0 0
        %1919 = vmatpush1.bf16.msra.mxu0 0
        %1920 = vmatprep.subr.bf16.mxu0 0
        %1921 = vmatpush1.bf16.msra.mxu0 %v1904
        %1922 = vmatprep.subr.bf16.mxu0 0
        %1923 = vmatpush2.bf16.msra.mxu0 0
        %1924 = vmatprep.subr.bf16.mxu0 0
        %1925 = vmatpush2.bf16.msra.mxu0 0
        %1926 = vmatprep.subr.bf16.mxu0 0
        %1927 = vmatpush2.bf16.msra.mxu0 0
        %1928 = vmatprep.subr.bf16.mxu0 0
        %1929 = vmatpush2.bf16.msra.mxu0 0
        %1930 = vmatprep.subr.bf16.mxu0 0
        %1931 = vmatpush2.bf16.msra.mxu0 0
        %1932 = vmatprep.subr.bf16.mxu0 0
        %1933 = vmatpush2.bf16.msra.mxu0 0
        %1934 = vmatprep.subr.bf16.mxu0 0
        %1935 = vmatpush2.bf16.msra.mxu0 0
        %1936 = vmatprep.subr.bf16.mxu0 0
        %1937 = vmatpush2.bf16.msra.mxu0 0
        %1938 = vmatprep.mubr.bf16.mxu0 0
        %1939 = vmatmul.mubr.bf16.gmra.mxu0 %v1901
        %v1940 = vpop.f32.mrf.mxu0
        %v1941 = vadd.f32 0.0, %v1940
        %v1942 = vpop.f32.mrf.mxu0
        %v1943 = vpop.f32.mrf.mxu0
        %v1944 = vpop.f32.mrf.mxu0
        %1945 = vdwg.mxu0
        %v1946 = vpack.c.bf16 %v1941, %v1941
        %v1948 = vsel %vm745, %v1946, 0
        %1950 = vmatprep.subr.bf16.mxu0 0
        %1951 = vmatpush1.bf16.msra.mxu0 0
        %1952 = vmatprep.subr.bf16.mxu0 0
        %1953 = vmatpush1.bf16.msra.mxu0 0
        %1954 = vmatprep.subr.bf16.mxu0 0
        %1955 = vmatpush1.bf16.msra.mxu0 0
        %1956 = vmatprep.subr.bf16.mxu0 0
        %1957 = vmatpush1.bf16.msra.mxu0 0
        %1958 = vmatprep.subr.bf16.mxu0 0
        %1959 = vmatpush1.bf16.msra.mxu0 0
        %1960 = vmatprep.subr.bf16.mxu0 0
        %1961 = vmatpush1.bf16.msra.mxu0 0
        %1962 = vmatprep.subr.bf16.mxu0 0
        %1963 = vmatpush1.bf16.msra.mxu0 0
        %1964 = vmatprep.subr.bf16.mxu0 0
        %1965 = vmatpush1.bf16.msra.mxu0 %v1574
        %1966 = vmatprep.subr.bf16.mxu0 0
        %1967 = vmatpush2.bf16.msra.mxu0 0
        %1968 = vmatprep.subr.bf16.mxu0 0
        %1969 = vmatpush2.bf16.msra.mxu0 0
        %1970 = vmatprep.subr.bf16.mxu0 0
        %1971 = vmatpush2.bf16.msra.mxu0 0
        %1972 = vmatprep.subr.bf16.mxu0 0
        %1973 = vmatpush2.bf16.msra.mxu0 0
        %1974 = vmatprep.subr.bf16.mxu0 0
        %1975 = vmatpush2.bf16.msra.mxu0 0
        %1976 = vmatprep.subr.bf16.mxu0 0
        %1977 = vmatpush2.bf16.msra.mxu0 0
        %1978 = vmatprep.subr.bf16.mxu0 0
        %1979 = vmatpush2.bf16.msra.mxu0 0
        %1980 = vmatprep.subr.bf16.mxu0 0
        %1981 = vmatpush2.bf16.msra.mxu0 0
        %1982 = vmatprep.mubr.bf16.mxu0 0
        %1983 = vmatmul.mubr.bf16.gmra.mxu0 %v1948
        %v1984 = vpop.f32.mrf.mxu0
        %v1985 = vadd.f32 0.0, %v1984
        %v1986 = vpop.f32.mrf.mxu0
        %v1987 = vpop.f32.mrf.mxu0
        %v1988 = vpop.f32.mrf.mxu0
        %1989 = vdwg.mxu0
        %v1990 = vadd.f32 %v1896, %v1985
        %v1992 = vlaneseq
        %v1993 = vshrl.u32 %v1992, 7
        %v1994 = vsub.s32 0, %v1993
        %v1995 = vrot.slane %v662, %v1994
        %v1997 = vadd.f32 %v1616, %v1995
        %v1998 = vadd.f32 %v1990, %v1995
        %v1999 = vld [vmem:[%s614] sm:$0x1]
        %v2000 = vld [vmem:[%s617] sm:$0x1]
        %v2001 = vsel %vm696, %v1997, 0.0
        %2002 = vadd.xlane.f32.xlu0 %v2001
        %v2003 = vpop.xlane.xlu0 %2002
        %v2004 = vsel %vm696, %v1998, 0.0
        %2005 = vadd.xlane.f32.xlu0 %v2004
        %v2006 = vpop.xlane.xlu0 %2005
        %v2007 = vrcp.pop 32.0
        %v2008 = vmul.f32 %v2003, %v2007
        %v2009 = vmul.f32 %v2006, %v2007
        %v2010 = vmul.f32 %v1997, %v1997
        %v2011 = vmul.f32 %v1998, %v1998
        %v2012 = vsel %vm696, %v2010, 0.0
        %2013 = vadd.xlane.f32.xlu0 %v2012
        %v2014 = vpop.xlane.xlu0 %2013
        %v2015 = vsel %vm696, %v2011, 0.0
        %2016 = vadd.xlane.f32.xlu0 %v2015
        %v2017 = vpop.xlane.xlu0 %2016
        %v2018 = vmul.f32 %v2014, %v2007
        %v2019 = vmul.f32 %v2017, %v2007
        %v2020 = vmul.f32 %v2008, %v2008
        %v2021 = vmul.f32 %v2009, %v2009
        %v2022 = vsub.f32 %v2018, %v2020
        %v2023 = vsub.f32 %v2019, %v2021
        %v2024 = vsub.f32 %v1997, %v2008
        %v2025 = vsub.f32 %v1998, %v2009
        %v2026 = vadd.f32 %v2022, 1e-06
        %v2027 = vadd.f32 %v2023, 1e-06
        %v2028 = vrsqrt.pop %v2026
        %v2029 = vrsqrt.pop %v2027
        %v2030 = vmul.f32 %v2024, %v2028
        %v2031 = vmul.f32 %v2025, %v2029
        %v2033 = vlaneseq
        %v2034 = vshrl.u32 %v2033, 7
        %v2035 = vsub.s32 0, %v2034
        %v2036 = vrot.slane %v1999, %v2035
        %v2038 = vmul.f32 %v2030, %v2036
        %v2039 = vmul.f32 %v2031, %v2036
        %v2041 = vlaneseq
        %v2042 = vshrl.u32 %v2041, 7
        %v2043 = vsub.s32 0, %v2042
        %v2044 = vrot.slane %v2000, %v2043
        %v2046 = vadd.f32 %v2038, %v2044
        %v2047 = vadd.f32 %v2039, %v2044
        %v2048 = vadd.f32 %v651, %v2046
        %v2049 = vadd.f32 %v652, %v2047
        %v2050 = vpack.c.bf16 %v2049, %v2048
        %v2052 = vlaneseq
        %v2053 = vshrl.u32 %v2052, 7
        %v2054 = vsub.s32 0, %v2053
        %v2055 = vrot.slane %v667, %v2054
        %v2061 = vunpack.c.l.b16 %v663
        %v2062 = vunpack.c.l.b16 %v664
        %v2063 = vunpack.c.l.b16 %v665
        %v2064 = vunpack.c.l.b16 %v666
        %v2065 = vpack.c.b16 %v2062, %v2061
        %v2066 = vpack.c.b16 %v2064, %v2063
        %v2070 = vsel %vm696, %v2050, 0
        %2072 = vmatprep.subr.bf16.mxu0 0
        %2073 = vmatpush1.bf16.msra.mxu0 0
        %2074 = vmatprep.subr.bf16.mxu0 0
        %2075 = vmatpush1.bf16.msra.mxu0 0
        %2076 = vmatprep.subr.bf16.mxu0 0
        %2077 = vmatpush1.bf16.msra.mxu0 0
        %2078 = vmatprep.subr.bf16.mxu0 0
        %2079 = vmatpush1.bf16.msra.mxu0 0
        %2080 = vmatprep.subr.bf16.mxu0 0
        %2081 = vmatpush1.bf16.msra.mxu0 0
        %2082 = vmatprep.subr.bf16.mxu0 0
        %2083 = vmatpush1.bf16.msra.mxu0 0
        %2084 = vmatprep.subr.bf16.mxu0 0
        %2085 = vmatpush1.bf16.msra.mxu0 %v2066
        %2086 = vmatprep.subr.bf16.mxu0 0
        %2087 = vmatpush1.bf16.msra.mxu0 %v2065
        %2088 = vmatprep.subr.bf16.mxu0 0
        %2089 = vmatpush2.bf16.msra.mxu0 0
        %2090 = vmatprep.subr.bf16.mxu0 0
        %2091 = vmatpush2.bf16.msra.mxu0 0
        %2092 = vmatprep.subr.bf16.mxu0 0
        %2093 = vmatpush2.bf16.msra.mxu0 0
        %2094 = vmatprep.subr.bf16.mxu0 0
        %2095 = vmatpush2.bf16.msra.mxu0 0
        %2096 = vmatprep.subr.bf16.mxu0 0
        %2097 = vmatpush2.bf16.msra.mxu0 0
        %2098 = vmatprep.subr.bf16.mxu0 0
        %2099 = vmatpush2.bf16.msra.mxu0 0
        %2100 = vmatprep.subr.bf16.mxu0 0
        %2101 = vmatpush2.bf16.msra.mxu0 0
        %2102 = vmatprep.subr.bf16.mxu0 0
        %2103 = vmatpush2.bf16.msra.mxu0 0
        %2104 = vmatprep.mubr.bf16.mxu0 0
        %2105 = vmatmul.mubr.bf16.gmra.mxu0 %v2070
        %v2106 = vpop.f32.mrf.mxu0
        %v2107 = vadd.f32 %v2055, %v2106
        %v2108 = vpop.f32.mrf.mxu0
        %v2109 = vpop.f32.mrf.mxu0
        %v2110 = vadd.f32 %v2055, %v2109
        %v2111 = vpop.f32.mrf.mxu0
        %2112 = vdwg.mxu0
        %v2113 = vmul.f32 %v2107, %v2107
        %v2114 = vmul.f32 %v2110, %v2110
        %v2115 = vmul.f32 %v2107, %v2113
        %v2116 = vmul.f32 %v2110, %v2114
        %v2117 = vmul.f32 %v2115, 0.044715
        %v2118 = vmul.f32 %v2116, 0.044715
        %v2119 = vadd.f32 %v2107, %v2117
        %v2120 = vadd.f32 %v2110, %v2118
        %v2121 = vmul.f32 %v2119, 0.7978846
        %v2122 = vmul.f32 %v2120, 0.7978846
        %v2123 = vtanh.pop %v2121
        %v2124 = vtanh.pop %v2122
        %v2125 = vadd.f32 %v2123, 1.0
        %v2126 = vadd.f32 %v2124, 1.0
        %v2127 = vmul.f32 %v2125, 0.5
        %v2128 = vmul.f32 %v2126, 0.5
        %v2129 = vmul.f32 %v2107, %v2127
        %v2130 = vmul.f32 %v2110, %v2128
        %v2131 = vpack.c.bf16 %v2130, %v2129
        %v2133 = vlaneseq
        %v2134 = vshrl.u32 %v2133, 7
        %v2135 = vsub.s32 0, %v2134
        %v2136 = vrot.slane %v676, %v2135
        %v2146 = vunpack.c.l.b16 %v668
        %v2147 = vunpack.c.l.b16 %v669
        %v2148 = vunpack.c.l.b16 %v670
        %v2149 = vunpack.c.l.b16 %v671
        %v2150 = vunpack.c.l.b16 %v672
        %v2151 = vunpack.c.l.b16 %v673
        %v2152 = vunpack.c.l.b16 %v674
        %v2153 = vunpack.c.l.b16 %v675
        %v2154 = vpack.c.b16 %v2147, %v2146
        %v2155 = vpack.c.b16 %v2149, %v2148
        %v2156 = vpack.c.b16 %v2151, %v2150
        %v2157 = vpack.c.b16 %v2153, %v2152
        %vm2162 = vcmask 523264
        %v2164 = vsel %vm2162, %v2131, 0
        %2166 = vmatprep.subr.bf16.mxu0 0
        %2167 = vmatpush1.bf16.msra.mxu0 0
        %2168 = vmatprep.subr.bf16.mxu0 0
        %2169 = vmatpush1.bf16.msra.mxu0 0
        %2170 = vmatprep.subr.bf16.mxu0 0
        %2171 = vmatpush1.bf16.msra.mxu0 0
        %2172 = vmatprep.subr.bf16.mxu0 0
        %2173 = vmatpush1.bf16.msra.mxu0 0
        %2174 = vmatprep.subr.bf16.mxu0 0
        %2175 = vmatpush1.bf16.msra.mxu0 %v2157
        %2176 = vmatprep.subr.bf16.mxu0 0
        %2177 = vmatpush1.bf16.msra.mxu0 %v2156
        %2178 = vmatprep.subr.bf16.mxu0 0
        %2179 = vmatpush1.bf16.msra.mxu0 %v2155
        %2180 = vmatprep.subr.bf16.mxu0 0
        %2181 = vmatpush1.bf16.msra.mxu0 %v2154
        %2182 = vmatprep.subr.bf16.mxu0 0
        %2183 = vmatpush2.bf16.msra.mxu0 0
        %2184 = vmatprep.subr.bf16.mxu0 0
        %2185 = vmatpush2.bf16.msra.mxu0 0
        %2186 = vmatprep.subr.bf16.mxu0 0
        %2187 = vmatpush2.bf16.msra.mxu0 0
        %2188 = vmatprep.subr.bf16.mxu0 0
        %2189 = vmatpush2.bf16.msra.mxu0 0
        %2190 = vmatprep.subr.bf16.mxu0 0
        %2191 = vmatpush2.bf16.msra.mxu0 0
        %2192 = vmatprep.subr.bf16.mxu0 0
        %2193 = vmatpush2.bf16.msra.mxu0 0
        %2194 = vmatprep.subr.bf16.mxu0 0
        %2195 = vmatpush2.bf16.msra.mxu0 0
        %2196 = vmatprep.subr.bf16.mxu0 0
        %2197 = vmatpush2.bf16.msra.mxu0 0
        %2198 = vmatprep.mubr.bf16.mxu0 0
        %2199 = vmatmul.mubr.bf16.gmra.mxu0 %v2164
        %v2200 = vpop.f32.mrf.mxu0
        %v2201 = vadd.f32 %v2136, %v2200
        %v2202 = vpop.f32.mrf.mxu0
        %v2203 = vpop.f32.mrf.mxu0
        %v2204 = vadd.f32 %v2136, %v2203
        %v2205 = vpop.f32.mrf.mxu0
        %2206 = vdwg.mxu0
        %v2207 = vld [vmem:[%s636] sm:$0x1]
        %v2208 = vld [vmem:[%s639] sm:$0x1]
        %v2209 = vsel %vm696, %v2201, 0.0
        %2210 = vadd.xlane.f32.xlu0 %v2209
        %v2211 = vpop.xlane.xlu0 %2210
        %v2212 = vsel %vm696, %v2204, 0.0
        %2213 = vadd.xlane.f32.xlu0 %v2212
        %v2214 = vpop.xlane.xlu0 %2213
        %v2215 = vmul.f32 %v2211, %v2007
        %v2216 = vmul.f32 %v2214, %v2007
        %v2217 = vmul.f32 %v2201, %v2201
        %v2218 = vmul.f32 %v2204, %v2204
        %v2219 = vsel %vm696, %v2217, 0.0
        %2220 = vadd.xlane.f32.xlu0 %v2219
        %v2221 = vpop.xlane.xlu0 %2220
        %v2222 = vsel %vm696, %v2218, 0.0
        %2223 = vadd.xlane.f32.xlu0 %v2222
        %v2224 = vpop.xlane.xlu0 %2223
        %v2225 = vmul.f32 %v2221, %v2007
        %v2226 = vmul.f32 %v2224, %v2007
        %v2227 = vmul.f32 %v2215, %v2215
        %v2228 = vmul.f32 %v2216, %v2216
        %v2229 = vsub.f32 %v2225, %v2227
        %v2230 = vsub.f32 %v2226, %v2228
        %v2231 = vsub.f32 %v2201, %v2215
        %v2232 = vsub.f32 %v2204, %v2216
        %v2233 = vadd.f32 %v2229, 1e-06
        %v2234 = vadd.f32 %v2230, 1e-06
        %v2235 = vrsqrt.pop %v2233
        %v2236 = vrsqrt.pop %v2234
        %v2237 = vmul.f32 %v2231, %v2235
        %v2238 = vmul.f32 %v2232, %v2236
        %v2240 = vlaneseq
        %v2241 = vshrl.u32 %v2240, 7
        %v2242 = vsub.s32 0, %v2241
        %v2243 = vrot.slane %v2207, %v2242
        %v2245 = vmul.f32 %v2237, %v2243
        %v2246 = vmul.f32 %v2238, %v2243
        %v2248 = vlaneseq
        %v2249 = vshrl.u32 %v2248, 7
        %v2250 = vsub.s32 0, %v2249
        %v2251 = vrot.slane %v2208, %v2250
        %v2253 = vadd.f32 %v2245, %v2251
        %v2254 = vadd.f32 %v2246, %v2251
        %v2255 = vadd.f32 %v2048, %v2253
        %v2256 = vadd.f32 %v2049, %v2254
        %2257 = vst.msk [vmem:[#allocation2] sm:$0xff] %vm696, %v2255
        %2258 = vst.msk [vmem:[#allocation2 + $0x8] sm:$0xff] %vm696, %v2256
        %p2259 = scmp.eq.s32.totalorder %s31, 1
        // Predicated region
        $region81: #{transformer_forward.1} parent=71 // pred_check
          %p2260 = pneg %p2259
        $region82: #{transformer_forward.1} parent=71 // pred_check_branch
          %2262 = sbr.rel (%p2260) target = $region84
        $region83: #{transformer_forward.1} parent=71 // pred_region
          %2263 = vst.msk [vmem:[#allocation6] sm:$0xff] %vm696, %v2255
          %2264 = vst.msk [vmem:[#allocation6 + $0x8] sm:$0xff] %vm696, %v2256
        $region84: #{transformer_forward.1} parent=71 // pred_fallthru
          _
        // Predicated region
        $region85: #{transformer_forward.1} parent=71 // pred_check
          %p2265 = pneg %p394
        $region86: #{transformer_forward.1} parent=71 // pred_check_branch
          %2267 = sbr.rel (%p2265) target = $region88
        $region87: #{transformer_forward.1} parent=71 // pred_region
          %s2268 = smul.u32 2, %s30
          %s2270 = ssub.s32 256, 256
          %2271 = vsyncadd [#allocation5], %s2270
          %s2272 = smul.addr %s2268, 128
          %s2273 = scalar_lea.hbm %s13, %s2272
          %s2274 = sshll.u32 [#allocation6], 4
          %s2275 = int_to_ptr.vmem [resolvable:$true] %s2274
          %2280 = dma.vmem_to_hbm [thread:$0]  %s2275, 256, %s2273, [#allocation5], 128, 128, 8
        $region88: #{transformer_forward.1} parent=71 // pred_fallthru
          _
        // Predicated region
        $region89: #{transformer_forward.1} parent=71 // pred_check
          %p2281 = pneg %p394
        $region90: #{transformer_forward.1} parent=71 // pred_check_branch
          %2283 = sbr.rel (%p2281) target = $region92
        $region91: #{transformer_forward.1} parent=71 // pred_region
          %2284 = dma.done [#allocation5], 256
        $region92: #{transformer_forward.1} parent=71 // pred_fallthru
          _
      $region72: #{transformer_forward.1} parent=5 // pred_fallthru
        _
      %p2285 = scmp.le.s32.totalorder 2, %s21
      // Predicated region
      $region93: #{transformer_forward.1} parent=5 // pred_check
        %p2286 = pneg %p2285
      $region94: #{transformer_forward.1} parent=5 // pred_check_branch
        %2288 = sbr.rel (%p2286) target = $region96
      $region95: #{transformer_forward.1} parent=5 // pred_region
        %s2289 = ssub.s32 %s21, 2
      $region96: #{transformer_forward.1} parent=5 // pred_fallthru
        _
    $region6: #{transformer_forward.1} parent=1 // loop_footer
      %s25 = sadd.s32 1, %s21
    $region7: #{transformer_forward.1} parent=1 // loop_footer_branch
      %20 = sbr.rel target = $region3
    $region8: #{transformer_forward.1} parent=1 // loop_exit
      _
    %2290 = vsyncpa [#allocation4], 1
    %s2291 = scalar_lea.sflag [#allocation4], 1
    %2292 = vsyncpa %s2291, 1
    %2293 = vsyncpa [#allocation5], 1
    %s2294 = scalar_lea.sflag [#allocation5], 1
    %2295 = vsyncpa %s2294, 1

</llo_original>
